<compile_context>
chip_gen: v7x
topology: tpu7x:2x2x1
jax: 0.10.0
libtpu: 0.0.40
codegen_flags: <defaults>
</compile_context>

<pallas_src>
import functools

import jax
import jax.numpy as jnp
from jax.experimental import pallas as pl
from jax.experimental.pallas import tpu as pltpu

LANE = 128
SUBLANE = 8


def _round_up(v, m):
    return (v + m - 1) // m * m


def mlp_kernel(alpha_ref,          # SMEM scalar-prefetch: (3,) f32 PReLU slopes
               x_ref,              # (TB, in_dim)            input tile
               w0s_ref, b0s_ref,   # fused [w0|ws]: (in_dim, 2N), (1, 2N)
               w1_ref, b1_ref,     # (N, N), (1, N)
               w2_ref, b2_ref,     # (N, N), (1, N)
               o_ref):             # (TB, out_dim)   out_dim = true (unpadded) width
    n = w1_ref.shape[0]            # padded (lane-dense) hidden width
    d_out = o_ref.shape[-1]        # true output width
    x = x_ref[...]

    # Fused layer-0 + shortcut: one shared-LHS, lane-dense K=in_dim dot.
    h0s = jnp.dot(x, w0s_ref[...], preferred_element_type=jnp.float32) + b0s_ref[...]
    h = h0s[:, :n]                 # layer-0 pre-activation
    sc = h0s[:, n:]                # linear shortcut (no activation)

    h = jnp.where(h > 0, h, alpha_ref[0] * h)

    h = jnp.dot(h.astype(w1_ref.dtype), w1_ref[...],
                preferred_element_type=jnp.float32) + b1_ref[...]
    h = jnp.where(h > 0, h, alpha_ref[1] * h)

    h = jnp.dot(h.astype(w2_ref.dtype), w2_ref[...],
                preferred_element_type=jnp.float32) + b2_ref[...]
    h = jnp.where(h > 0, h, alpha_ref[2] * h)

    # Store only the real columns (padded hidden columns are provably zero and
    # are simply never written).
    # TODO(synk): a 2-rows-per-128-lane output repack would restore unmasked
    # 128-wide vst at the cost of an in-kernel relayout; skipped for robustness.
    o_ref[...] = (h + sc)[:, :d_out].astype(o_ref.dtype)


def prepare_params(params, dtype=jnp.float32):
    """One-time parameter prep (call once, reuse across forwards).

    Pads hidden width to a lane-dense multiple of 128 (mathematically inert:
    padded columns have zero weight+bias so stay exactly 0 through the PReLUs)
    and fuses [w0 | w_shortcut] so layer-0 and the shortcut share one K=in_dim
    dot.  `dtype` selects the streaming dtype of the weight matrices (bf16
    halves their HBM/VMEM bytes); biases and accumulation stay f32.
    """
    out_dim = params["w0"].shape[1]
    n_pad = _round_up(max(out_dim, LANE), LANE)

    def pad_cols(a, cols):
        return jnp.pad(a, ((0, 0), (0, cols - a.shape[1])))

    def pad_rows(a, rows):
        return jnp.pad(a, ((0, rows - a.shape[0]), (0, 0)))

    w0s = jnp.concatenate([pad_cols(params["w0"], n_pad),
                           pad_cols(params["ws"], n_pad)], axis=1).astype(dtype)
    b0s = jnp.concatenate([pad_cols(params["b0"], n_pad),
                           pad_cols(params["bs"], n_pad)], axis=1).astype(jnp.float32)
    w1 = pad_cols(pad_rows(params["w1"], n_pad), n_pad).astype(dtype)
    b1 = pad_cols(params["b1"], n_pad).astype(jnp.float32)
    w2 = pad_cols(pad_rows(params["w2"], n_pad), n_pad).astype(dtype)
    b2 = pad_cols(params["b2"], n_pad).astype(jnp.float32)
    prep = dict(alpha=params["alpha"].astype(jnp.float32),
                w0s=w0s, b0s=b0s, w1=w1, b1=b1, w2=w2, b2=b2)
    return prep, out_dim


@functools.partial(jax.jit, static_argnames=("out_dim", "tb"))
def mlp_forward(x, prep, out_dim, tb=128):
    """x: (B, in_dim).  prep: output of prepare_params.  Returns (B, out_dim) f32."""
    B, in_dim = x.shape
    n_pad = prep["w1"].shape[0]

    # Batch tiling: no padding/slicing of x or the output.  Cap the tile so the
    # grid keeps >= ~8 steps (>= 4 per TC on v7x) for DMA/compute overlap; the
    # ragged edge block is masked by Pallas.
    tb_req = _round_up(max(tb, SUBLANE), SUBLANE)
    depth_cap = max(SUBLANE, _round_up(pl.cdiv(B, 8), SUBLANE))
    tb_eff = min(tb_req, depth_cap)
    grid_b = pl.cdiv(B, tb_eff)

    # VMEM budget (double-buffered tiles + resident weights).  v5e's default
    # scoped-VMEM limit is only 16 MiB, so request explicitly once the working
    # set could exceed it; cap safely below v7x's 64 MiB physical VMEM.
    x_isz = x.dtype.itemsize
    w_isz = prep["w1"].dtype.itemsize
    vmem_bytes = (2 * tb_eff * in_dim * x_isz            # x tile x2
                  + 2 * tb_eff * out_dim * 4             # out tile x2
                  + 2 * (in_dim * 2 * n_pad + 2 * n_pad * n_pad) * w_isz
                  + 2 * 4 * n_pad * 4)                   # biases x2
    vmem_limit = None
    if vmem_bytes > (12 << 20):
        vmem_limit = int(min(vmem_bytes + (8 << 20), 48 << 20))

    grid_spec = pltpu.PrefetchScalarGridSpec(
        num_scalar_prefetch=1,                            # PReLU alphas -> SMEM
        grid=(grid_b,),
        in_specs=[
            pl.BlockSpec((tb_eff, in_dim), lambda i, a: (i, 0)),       # x
            # Weights/biases: constant index_map -> fetched once, resident.
            pl.BlockSpec((in_dim, 2 * n_pad), lambda i, a: (0, 0)),    # [w0|ws]
            pl.BlockSpec((1, 2 * n_pad), lambda i, a: (0, 0)),         # [b0|bs]
            pl.BlockSpec((n_pad, n_pad), lambda i, a: (0, 0)),         # w1
            pl.BlockSpec((1, n_pad), lambda i, a: (0, 0)),             # b1
            pl.BlockSpec((n_pad, n_pad), lambda i, a: (0, 0)),         # w2
            pl.BlockSpec((1, n_pad), lambda i, a: (0, 0)),             # b2
        ],
        out_specs=pl.BlockSpec((tb_eff, out_dim), lambda i, a: (i, 0)),
    )

    return pl.pallas_call(
        mlp_kernel,
        out_shape=jax.ShapeDtypeStruct((B, out_dim), jnp.float32),
        grid_spec=grid_spec,
        compiler_params=pltpu.CompilerParams(
            dimension_semantics=("parallel",),
            vmem_limit_bytes=vmem_limit),
    )(prep["alpha"], x, prep["w0s"], prep["b0s"],
      prep["w1"], prep["b1"], prep["w2"], prep["b2"])


def init_params(key, in_dim, out_dim):
    """Deterministic synthetic parameters matching nn.Linear / nn.PReLU shapes."""
    ks = jax.random.split(key, 8)

    def lin(kw, kb, fan_in, fan_out):
        bound = 1.0 / jnp.sqrt(fan_in)
        # PyTorch stores (out, in); we store transposed (in, out) for x @ W.
        w = jax.random.uniform(kw, (fan_in, fan_out), jnp.float32, -bound, bound)
        b = jax.random.uniform(kb, (1, fan_out), jnp.float32, -bound, bound)
        return w, b

    w0, b0 = lin(ks[0], ks[1], in_dim, out_dim)
    w1, b1 = lin(ks[2], ks[3], out_dim, out_dim)
    w2, b2 = lin(ks[4], ks[5], out_dim, out_dim)
    ws, bs = lin(ks[6], ks[7], in_dim, out_dim)
    alpha = jnp.full((3,), 0.25, jnp.float32)   # PReLU default init
    return dict(w0=w0, b0=b0, w1=w1, b1=b1, w2=w2, b2=b2,
                ws=ws, bs=bs, alpha=alpha)


def mlp_reference(x, p, cast=None):
    """Pure-JAX reference.  cast=jnp.bfloat16 mirrors the bf16-streaming kernel
    math (bf16-rounded matmul inputs, f32 accumulation / biases / PReLU)."""
    c = (lambda v: v.astype(cast)) if cast is not None else (lambda v: v)

    def prelu(v, a):
        return jnp.where(v > 0, v, a * v)

    h = prelu(jnp.dot(c(x), c(p["w0"]), preferred_element_type=jnp.float32) + p["b0"],
              p["alpha"][0])
    h = prelu(jnp.dot(c(h), c(p["w1"]), preferred_element_type=jnp.float32) + p["b1"],
              p["alpha"][1])
    h = prelu(jnp.dot(c(h), c(p["w2"]), preferred_element_type=jnp.float32) + p["b2"],
              p["alpha"][2])
    return h + jnp.dot(c(x), c(p["ws"]), preferred_element_type=jnp.float32) + p["bs"]


if __name__ == "__main__":
    key = jax.random.PRNGKey(0)
    k_x, k_p = jax.random.split(key)

    # grid = cdiv(1000, 128) = 8 steps (ragged edge block exercised).
    B, in_dim, out_dim = 1000, 32, 64
    x = jax.random.normal(k_x, (B, in_dim), jnp.float32)
    params = init_params(k_p, in_dim, out_dim)

    # ---- f32 path: exact parity with the PyTorch / f32 reference ----
    prep32, od = prepare_params(params, dtype=jnp.float32)
    out = jax.block_until_ready(mlp_forward(x, prep32, out_dim=od, tb=128))
    ref = mlp_reference(x, params)
    assert out.shape == (B, out_dim)
    assert jnp.allclose(out, ref, atol=1e-4, rtol=1e-5)

    # ---- bf16 streaming path: halves HBM bytes; f32 accumulation/bias/PReLU ----
    prep16, _ = prepare_params(params, dtype=jnp.bfloat16)
    out16 = jax.block_until_ready(
        mlp_forward(x.astype(jnp.bfloat16), prep16, out_dim=od, tb=128))
    ref16 = mlp_reference(x, params, cast=jnp.bfloat16)
    assert jnp.allclose(out16, ref16, atol=5e-3, rtol=5e-3)

    print("KERNEL_OK")
</pallas_src>

<mosaic_0001>
module attributes {stable_mosaic.version = 11 : i64} {
  func.func @mlp_kernel(%arg0: i32, %arg1: memref<3xf32, #tpu.memory_space<smem>>, %arg2: memref<128x32xf32, #tpu.memory_space<vmem>>, %arg3: memref<32x256xf32, #tpu.memory_space<vmem>>, %arg4: memref<1x256xf32, #tpu.memory_space<vmem>>, %arg5: memref<128x128xf32, #tpu.memory_space<vmem>>, %arg6: memref<1x128xf32, #tpu.memory_space<vmem>>, %arg7: memref<128x128xf32, #tpu.memory_space<vmem>>, %arg8: memref<1x128xf32, #tpu.memory_space<vmem>>, %arg9: memref<128x64xf32, #tpu.memory_space<vmem>>) attributes {dimension_semantics = [#tpu.dimension_semantics<parallel>], iteration_bounds = array<i64: 8>, scalar_prefetch = 1 : i64, scratch_operands = 0 : i64, tpu.core_type = #tpu.core_type<tc>, window_params = [{transform_indices = @transform_0, window_bounds = array<i64: 128, 32>}, {pipeline_mode = #tpu.pipeline_mode<synchronous>, transform_indices = @transform_1, window_bounds = array<i64: 32, 256>}, {pipeline_mode = #tpu.pipeline_mode<synchronous>, transform_indices = @transform_2, window_bounds = array<i64: 1, 256>}, {pipeline_mode = #tpu.pipeline_mode<synchronous>, transform_indices = @transform_3, window_bounds = array<i64: 128, 128>}, {pipeline_mode = #tpu.pipeline_mode<synchronous>, transform_indices = @transform_4, window_bounds = array<i64: 1, 128>}, {pipeline_mode = #tpu.pipeline_mode<synchronous>, transform_indices = @transform_5, window_bounds = array<i64: 128, 128>}, {pipeline_mode = #tpu.pipeline_mode<synchronous>, transform_indices = @transform_6, window_bounds = array<i64: 1, 128>}, {transform_indices = @transform_7, window_bounds = array<i64: 128, 64>}]} {
    %c0 = arith.constant 0 : index
    %c0_0 = arith.constant 0 : index
    %0 = vector.load %arg2[%c0, %c0_0] : memref<128x32xf32, #tpu.memory_space<vmem>>, vector<128x32xf32>
    %c0_1 = arith.constant 0 : index
    %c0_2 = arith.constant 0 : index
    %1 = vector.load %arg3[%c0_1, %c0_2] : memref<32x256xf32, #tpu.memory_space<vmem>>, vector<32x256xf32>
    %cst = arith.constant dense<0.000000e+00> : vector<128x256xf32>
    %2 = tpu.matmul %0, %1, %cst {dimension_numbers = #tpu.dot_dimension_numbers<[1], [0], [0], [1], [0, 0, 1, 1], [], []>} : vector<128x32xf32>, vector<32x256xf32>, vector<128x256xf32> -> vector<128x256xf32>
    %c0_3 = arith.constant 0 : index
    %c0_4 = arith.constant 0 : index
    %3 = vector.load %arg4[%c0_3, %c0_4] : memref<1x256xf32, #tpu.memory_space<vmem>>, vector<1x256xf32>
    %4 = vector.broadcast %3 : vector<1x256xf32> to vector<128x256xf32>
    %5 = arith.addf %2, %4 : vector<128x256xf32>
    %6 = vector.extract_strided_slice %5 {offsets = [0, 0], sizes = [128, 128], strides = [1, 1]} : vector<128x256xf32> to vector<128x128xf32>
    %7 = vector.extract_strided_slice %5 {offsets = [0, 128], sizes = [128, 128], strides = [1, 1]} : vector<128x256xf32> to vector<128x128xf32>
    %cst_5 = arith.constant 0.000000e+00 : f32
    %8 = vector.broadcast %cst_5 : f32 to vector<128x128xf32>
    %9 = arith.cmpf ogt, %6, %8 : vector<128x128xf32>
    %c0_6 = arith.constant 0 : index
    %10 = memref.load %arg1[%c0_6] : memref<3xf32, #tpu.memory_space<smem>>
    %11 = vector.broadcast %10 : f32 to vector<128x128xf32>
    %12 = arith.mulf %11, %6 : vector<128x128xf32>
    %13 = arith.select %9, %6, %12 : vector<128x128xi1>, vector<128x128xf32>
    %c0_7 = arith.constant 0 : index
    %c0_8 = arith.constant 0 : index
    %14 = vector.load %arg5[%c0_7, %c0_8] : memref<128x128xf32, #tpu.memory_space<vmem>>, vector<128x128xf32>
    %cst_9 = arith.constant dense<0.000000e+00> : vector<128x128xf32>
    %15 = tpu.matmul %13, %14, %cst_9 {dimension_numbers = #tpu.dot_dimension_numbers<[1], [0], [0], [1], [0, 0, 1, 1], [], []>} : vector<128x128xf32>, vector<128x128xf32>, vector<128x128xf32> -> vector<128x128xf32>
    %c0_10 = arith.constant 0 : index
    %c0_11 = arith.constant 0 : index
    %16 = vector.load %arg6[%c0_10, %c0_11] : memref<1x128xf32, #tpu.memory_space<vmem>>, vector<1x128xf32>
    %17 = vector.broadcast %16 : vector<1x128xf32> to vector<128x128xf32>
    %18 = arith.addf %15, %17 : vector<128x128xf32>
    %cst_12 = arith.constant 0.000000e+00 : f32
    %19 = vector.broadcast %cst_12 : f32 to vector<128x128xf32>
    %20 = arith.cmpf ogt, %18, %19 : vector<128x128xf32>
    %c1 = arith.constant 1 : index
    %21 = memref.load %arg1[%c1] : memref<3xf32, #tpu.memory_space<smem>>
    %22 = vector.broadcast %21 : f32 to vector<128x128xf32>
    %23 = arith.mulf %22, %18 : vector<128x128xf32>
    %24 = arith.select %20, %18, %23 : vector<128x128xi1>, vector<128x128xf32>
    %c0_13 = arith.constant 0 : index
    %c0_14 = arith.constant 0 : index
    %25 = vector.load %arg7[%c0_13, %c0_14] : memref<128x128xf32, #tpu.memory_space<vmem>>, vector<128x128xf32>
    %cst_15 = arith.constant dense<0.000000e+00> : vector<128x128xf32>
    %26 = tpu.matmul %24, %25, %cst_15 {dimension_numbers = #tpu.dot_dimension_numbers<[1], [0], [0], [1], [0, 0, 1, 1], [], []>} : vector<128x128xf32>, vector<128x128xf32>, vector<128x128xf32> -> vector<128x128xf32>
    %c0_16 = arith.constant 0 : index
    %c0_17 = arith.constant 0 : index
    %27 = vector.load %arg8[%c0_16, %c0_17] : memref<1x128xf32, #tpu.memory_space<vmem>>, vector<1x128xf32>
    %28 = vector.broadcast %27 : vector<1x128xf32> to vector<128x128xf32>
    %29 = arith.addf %26, %28 : vector<128x128xf32>
    %cst_18 = arith.constant 0.000000e+00 : f32
    %30 = vector.broadcast %cst_18 : f32 to vector<128x128xf32>
    %31 = arith.cmpf ogt, %29, %30 : vector<128x128xf32>
    %c2 = arith.constant 2 : index
    %32 = memref.load %arg1[%c2] : memref<3xf32, #tpu.memory_space<smem>>
    %33 = vector.broadcast %32 : f32 to vector<128x128xf32>
    %34 = arith.mulf %33, %29 : vector<128x128xf32>
    %35 = arith.select %31, %29, %34 : vector<128x128xi1>, vector<128x128xf32>
    %36 = arith.addf %35, %7 : vector<128x128xf32>
    %37 = vector.extract_strided_slice %36 {offsets = [0, 0], sizes = [128, 64], strides = [1, 1]} : vector<128x128xf32> to vector<128x64xf32>
    %c0_19 = arith.constant 0 : index
    %c0_20 = arith.constant 0 : index
    %38 = vector.load %arg9[%c0_19, %c0_20] : memref<128x64xf32, #tpu.memory_space<vmem>>, vector<128x64xf32>
    tpu.vector_store %arg9[%c0_19, %c0_20], %37 {strides = array<i32>} : memref<128x64xf32, #tpu.memory_space<vmem>>, vector<128x64xf32>,
    return
  }
  func.func @transform_0(%arg0: i32, %arg1: memref<3xf32, #tpu.memory_space<smem>>) -> (i32, i32) {
    %c0_i32 = arith.constant 0 : i32
    %c0_i32_0 = arith.constant 0 : i32
    return %arg0, %c0_i32 : i32, i32
  }
  func.func @transform_1(%arg0: i32, %arg1: memref<3xf32, #tpu.memory_space<smem>>) -> (i32, i32) {
    %c0_i32 = arith.constant 0 : i32
    %c0_i32_0 = arith.constant 0 : i32
    %c0_i32_1 = arith.constant 0 : i32
    return %c0_i32, %c0_i32_0 : i32, i32
  }
  func.func @transform_2(%arg0: i32, %arg1: memref<3xf32, #tpu.memory_space<smem>>) -> (i32, i32) {
    %c0_i32 = arith.constant 0 : i32
    %c0_i32_0 = arith.constant 0 : i32
    %c0_i32_1 = arith.constant 0 : i32
    return %c0_i32, %c0_i32_0 : i32, i32
  }
  func.func @transform_3(%arg0: i32, %arg1: memref<3xf32, #tpu.memory_space<smem>>) -> (i32, i32) {
    %c0_i32 = arith.constant 0 : i32
    %c0_i32_0 = arith.constant 0 : i32
    %c0_i32_1 = arith.constant 0 : i32
    return %c0_i32, %c0_i32_0 : i32, i32
  }
  func.func @transform_4(%arg0: i32, %arg1: memref<3xf32, #tpu.memory_space<smem>>) -> (i32, i32) {
    %c0_i32 = arith.constant 0 : i32
    %c0_i32_0 = arith.constant 0 : i32
    %c0_i32_1 = arith.constant 0 : i32
    return %c0_i32, %c0_i32_0 : i32, i32
  }
  func.func @transform_5(%arg0: i32, %arg1: memref<3xf32, #tpu.memory_space<smem>>) -> (i32, i32) {
    %c0_i32 = arith.constant 0 : i32
    %c0_i32_0 = arith.constant 0 : i32
    %c0_i32_1 = arith.constant 0 : i32
    return %c0_i32, %c0_i32_0 : i32, i32
  }
  func.func @transform_6(%arg0: i32, %arg1: memref<3xf32, #tpu.memory_space<smem>>) -> (i32, i32) {
    %c0_i32 = arith.constant 0 : i32
    %c0_i32_0 = arith.constant 0 : i32
    %c0_i32_1 = arith.constant 0 : i32
    return %c0_i32, %c0_i32_0 : i32, i32
  }
  func.func @transform_7(%arg0: i32, %arg1: memref<3xf32, #tpu.memory_space<smem>>) -> (i32, i32) {
    %c0_i32 = arith.constant 0 : i32
    %c0_i32_0 = arith.constant 0 : i32
    return %arg0, %c0_i32 : i32, i32
  }
}

</mosaic_0001>

<llo_original>
// kernel: mlp_forward.1
$region0: #{mlp_forward.1}
  #allocation0 [shape = 'u32[]', space=smem, size = 0x4, offset = 0x4, fixed_abs, tag = 'smem constant byte address 0x4 - core index']
  #allocation1 [shape = 'u32[144,128]{1,0:T(1,128)}', space=vmem, size = 0x12000, scoped, tag = 'internal scratch']
  #allocation2 [shape = 's32[1]{0}', space=sflag, size = 0x4, scoped, tag = 'scoped memory for mlp_forward.1']
  #allocation3 [shape = 'u8[512]{0}', space=smem, size = 0x200, scoped, tag = 'prefetched SMEM operand 0']
  %s0 = inlined_call_operand.vmem [shape: f32[3], index: 0, kind: input, shape index: {}]
  %s1 = inlined_call_operand.vmem [shape: f32[1000,32], index: 1, kind: input, shape index: {}]
  %s2 = inlined_call_operand.vmem [shape: f32[32,256], index: 2, kind: input, shape index: {}]
  %s3 = inlined_call_operand.vmem [shape: f32[1,256], index: 3, kind: input, shape index: {}]
  %s4 = inlined_call_operand.vmem [shape: f32[128,128], index: 4, kind: input, shape index: {}]
  %s5 = inlined_call_operand.vmem [shape: f32[1,128], index: 5, kind: input, shape index: {}]
  %s6 = inlined_call_operand.vmem [shape: f32[128,128], index: 6, kind: input, shape index: {}]
  %s7 = inlined_call_operand.vmem [shape: f32[1,128], index: 7, kind: input, shape index: {}]
  %s8 = inlined_call_operand.vmem [shape: f32[1000,64], index: 8, kind: output, shape index: {}]
  %s9 = sld [smem:[#allocation0]]
  $region109: #{mlp_forward.1} parent=0
    _
  %s11 = ssub.s32 1, %s9
  %s12 = scalar_select 0, %s11, %s9
  %s13 = sshll.u32 %s0, 4
  %s14 = int_to_ptr.vmem [resolvable:$true] %s13
  %16 = dma.vmem_to_smem %s14, 16, [#allocation3], [#allocation2]
  %17 = dma.done [#allocation2], 16
  %18 = sfence
  $region1: #{mlp_forward.1} parent=0
    #allocation4 [shape = 'u8[131072]{0}', space=vmem, size = 0x20000, scoped, tag = 'output window, operand 0']
    loop: start=0, step=1, limit=10
    $region2: #{mlp_forward.1} parent=1 // loop_pre_header
      _
    $region3: #{mlp_forward.1} parent=1 // loop_header
      %s20 = sphi 0, %s24
      %p21 = scmp.ge.s32.totalorder %s20, 10
      %s30 = sphi 0, %s32
      %s33 = sphi 0, %s30
      %s34 = sphi 0, %s33
      %s50 = sphi 0, %s34
      %s54 = sphi 0, %s54
      %s56 = sphi 0, %s54
      %s57 = sphi 0, %s56
      %s71 = sphi 0, %s57
      %s75 = sphi 0, %s75
      %s77 = sphi 0, %s75
      %s78 = sphi 0, %s77
      %s92 = sphi 0, %s78
      %s96 = sphi 0, %s96
      %s98 = sphi 0, %s96
      %s99 = sphi 0, %s98
      %s113 = sphi 0, %s99
      %s117 = sphi 0, %s117
      %s119 = sphi 0, %s117
      %s120 = sphi 0, %s119
      %s134 = sphi 0, %s120
      %s138 = sphi 0, %s138
      %s140 = sphi 0, %s138
      %s141 = sphi 0, %s140
      %s155 = sphi 0, %s141
      %s159 = sphi 0, %s159
      %s161 = sphi 0, %s159
      %s162 = sphi 0, %s161
      %s176 = sphi 0, %s162
      %s182 = sphi 0, %s184
      %s185 = sphi 0, %s182
      %s186 = sphi 0, %s185
      %s202 = sphi 0, %s186
    $region4: #{mlp_forward.1} parent=1 // loop_header_branch
      %23 = sbr.rel (%p21) target = $region8
    $region5: #{mlp_forward.1} parent=1 // loop_body
      %s25 = ssub.s32 %s20, 1
      %s26 = ssub.s32 %s20, 2
      %s27 = sadd.s32 %s20, 1
      %s28 = ssub.s32 %s20, %s27
      %p29 = scmp.eq.s32.totalorder %s28, 0
      %s31 = sadd.s32 %s30, 1
      %s32 = scalar_select %p29, %s30, %s31
      %p35 = pneg %p29
      %p36 = scmp.eq.s32.totalorder %s20, 7
      %p37 = por %p35, %p36
      %p38 = scmp.ne.s32.totalorder %s30, %s33
      %p39 = scmp.eq.s32.totalorder %s20, 0
      %p40 = por %p38, %p39
      %p41 = scmp.ne.s32.totalorder %s30, %s33
      %p42 = scmp.eq.s32.totalorder %s25, 7
      %p43 = por %p41, %p42
      %p44 = scmp.ne.s32.totalorder %s33, %s34
      %p45 = scmp.eq.s32.totalorder %s25, 0
      %p46 = por %p44, %p45
      %p47 = scmp.ne.s32.totalorder %s33, %s34
      %p48 = scmp.eq.s32.totalorder %s26, 7
      %p49 = por %p47, %p48
      %p51 = scmp.ne.s32.totalorder %s34, %s50
      %p52 = scmp.eq.s32.totalorder %s26, 0
      %p53 = por %p51, %p52
      %s55 = sadd.s32 %s54, 1
      %p58 = scmp.eq.s32.totalorder %s20, 7
      %p59 = scmp.ne.s32.totalorder %s54, %s56
      %p60 = scmp.eq.s32.totalorder %s20, 0
      %p61 = por %p59, %p60
      %p62 = scmp.ne.s32.totalorder %s54, %s56
      %p63 = scmp.eq.s32.totalorder %s25, 7
      %p64 = por %p62, %p63
      %p65 = scmp.ne.s32.totalorder %s56, %s57
      %p66 = scmp.eq.s32.totalorder %s25, 0
      %p67 = por %p65, %p66
      %p68 = scmp.ne.s32.totalorder %s56, %s57
      %p69 = scmp.eq.s32.totalorder %s26, 7
      %p70 = por %p68, %p69
      %p72 = scmp.ne.s32.totalorder %s57, %s71
      %p73 = scmp.eq.s32.totalorder %s26, 0
      %p74 = por %p72, %p73
      %s76 = sadd.s32 %s75, 1
      %p79 = scmp.eq.s32.totalorder %s20, 7
      %p80 = scmp.ne.s32.totalorder %s75, %s77
      %p81 = scmp.eq.s32.totalorder %s20, 0
      %p82 = por %p80, %p81
      %p83 = scmp.ne.s32.totalorder %s75, %s77
      %p84 = scmp.eq.s32.totalorder %s25, 7
      %p85 = por %p83, %p84
      %p86 = scmp.ne.s32.totalorder %s77, %s78
      %p87 = scmp.eq.s32.totalorder %s25, 0
      %p88 = por %p86, %p87
      %p89 = scmp.ne.s32.totalorder %s77, %s78
      %p90 = scmp.eq.s32.totalorder %s26, 7
      %p91 = por %p89, %p90
      %p93 = scmp.ne.s32.totalorder %s78, %s92
      %p94 = scmp.eq.s32.totalorder %s26, 0
      %p95 = por %p93, %p94
      %s97 = sadd.s32 %s96, 1
      %p100 = scmp.eq.s32.totalorder %s20, 7
      %p101 = scmp.ne.s32.totalorder %s96, %s98
      %p102 = scmp.eq.s32.totalorder %s20, 0
      %p103 = por %p101, %p102
      %p104 = scmp.ne.s32.totalorder %s96, %s98
      %p105 = scmp.eq.s32.totalorder %s25, 7
      %p106 = por %p104, %p105
      %p107 = scmp.ne.s32.totalorder %s98, %s99
      %p108 = scmp.eq.s32.totalorder %s25, 0
      %p109 = por %p107, %p108
      %p110 = scmp.ne.s32.totalorder %s98, %s99
      %p111 = scmp.eq.s32.totalorder %s26, 7
      %p112 = por %p110, %p111
      %p114 = scmp.ne.s32.totalorder %s99, %s113
      %p115 = scmp.eq.s32.totalorder %s26, 0
      %p116 = por %p114, %p115
      %s118 = sadd.s32 %s117, 1
      %p121 = scmp.eq.s32.totalorder %s20, 7
      %p122 = scmp.ne.s32.totalorder %s117, %s119
      %p123 = scmp.eq.s32.totalorder %s20, 0
      %p124 = por %p122, %p123
      %p125 = scmp.ne.s32.totalorder %s117, %s119
      %p126 = scmp.eq.s32.totalorder %s25, 7
      %p127 = por %p125, %p126
      %p128 = scmp.ne.s32.totalorder %s119, %s120
      %p129 = scmp.eq.s32.totalorder %s25, 0
      %p130 = por %p128, %p129
      %p131 = scmp.ne.s32.totalorder %s119, %s120
      %p132 = scmp.eq.s32.totalorder %s26, 7
      %p133 = por %p131, %p132
      %p135 = scmp.ne.s32.totalorder %s120, %s134
      %p136 = scmp.eq.s32.totalorder %s26, 0
      %p137 = por %p135, %p136
      %s139 = sadd.s32 %s138, 1
      %p142 = scmp.eq.s32.totalorder %s20, 7
      %p143 = scmp.ne.s32.totalorder %s138, %s140
      %p144 = scmp.eq.s32.totalorder %s20, 0
      %p145 = por %p143, %p144
      %p146 = scmp.ne.s32.totalorder %s138, %s140
      %p147 = scmp.eq.s32.totalorder %s25, 7
      %p148 = por %p146, %p147
      %p149 = scmp.ne.s32.totalorder %s140, %s141
      %p150 = scmp.eq.s32.totalorder %s25, 0
      %p151 = por %p149, %p150
      %p152 = scmp.ne.s32.totalorder %s140, %s141
      %p153 = scmp.eq.s32.totalorder %s26, 7
      %p154 = por %p152, %p153
      %p156 = scmp.ne.s32.totalorder %s141, %s155
      %p157 = scmp.eq.s32.totalorder %s26, 0
      %p158 = por %p156, %p157
      %s160 = sadd.s32 %s159, 1
      %p163 = scmp.eq.s32.totalorder %s20, 7
      %p164 = scmp.ne.s32.totalorder %s159, %s161
      %p165 = scmp.eq.s32.totalorder %s20, 0
      %p166 = por %p164, %p165
      %p167 = scmp.ne.s32.totalorder %s159, %s161
      %p168 = scmp.eq.s32.totalorder %s25, 7
      %p169 = por %p167, %p168
      %p170 = scmp.ne.s32.totalorder %s161, %s162
      %p171 = scmp.eq.s32.totalorder %s25, 0
      %p172 = por %p170, %p171
      %p173 = scmp.ne.s32.totalorder %s161, %s162
      %p174 = scmp.eq.s32.totalorder %s26, 7
      %p175 = por %p173, %p174
      %p177 = scmp.ne.s32.totalorder %s162, %s176
      %p178 = scmp.eq.s32.totalorder %s26, 0
      %p179 = por %p177, %p178
      %s180 = ssub.s32 %s20, %s27
      %p181 = scmp.eq.s32.totalorder %s180, 0
      %s183 = sadd.s32 %s182, 1
      %s184 = scalar_select %p181, %s182, %s183
      %p187 = pneg %p181
      %p188 = scmp.eq.s32.totalorder %s20, 7
      %p189 = por %p187, %p188
      %p190 = scmp.ne.s32.totalorder %s182, %s185
      %p191 = scmp.eq.s32.totalorder %s20, 0
      %p192 = por %p190, %p191
      %p193 = scmp.ne.s32.totalorder %s182, %s185
      %p194 = scmp.eq.s32.totalorder %s25, 7
      %p195 = por %p193, %p194
      %p196 = scmp.ne.s32.totalorder %s185, %s186
      %p197 = scmp.eq.s32.totalorder %s25, 0
      %p198 = por %p196, %p197
      %p199 = scmp.ne.s32.totalorder %s185, %s186
      %p200 = scmp.eq.s32.totalorder %s26, 7
      %p201 = por %p199, %p200
      %p203 = scmp.ne.s32.totalorder %s186, %s202
      %p204 = scmp.eq.s32.totalorder %s26, 0
      %p205 = por %p203, %p204
      %p206 = scmp.le.s32.totalorder 1, %s20
      %p207 = scmp.lt.s32.totalorder %s20, 9
      %p208 = pnand %p206, %p207
      %p209 = pneg %p208
      // Predicated region
      $region9: #{mlp_forward.1} parent=5 // pred_check
        _
      $region10: #{mlp_forward.1} parent=5 // pred_check_branch
        %211 = sbr.rel (%p208) target = $region12
      $region11: #{mlp_forward.1} parent=5 // pred_region
        %s212 = ssub.s32 %s20, 1
        // Predicated region
        $region13: #{mlp_forward.1} parent=11 // pred_check
          %p213 = pneg %p67
        $region14: #{mlp_forward.1} parent=11 // pred_check_branch
          %215 = sbr.rel (%p213) target = $region16
        $region15: #{mlp_forward.1} parent=11 // pred_region
          _
        $region16: #{mlp_forward.1} parent=11 // pred_fallthru
          _
        // Predicated region
        $region17: #{mlp_forward.1} parent=11 // pred_check
          %p216 = pneg %p88
        $region18: #{mlp_forward.1} parent=11 // pred_check_branch
          %218 = sbr.rel (%p216) target = $region20
        $region19: #{mlp_forward.1} parent=11 // pred_region
          _
        $region20: #{mlp_forward.1} parent=11 // pred_fallthru
          _
        // Predicated region
        $region21: #{mlp_forward.1} parent=11 // pred_check
          %p219 = pneg %p109
        $region22: #{mlp_forward.1} parent=11 // pred_check_branch
          %221 = sbr.rel (%p219) target = $region24
        $region23: #{mlp_forward.1} parent=11 // pred_region
          _
        $region24: #{mlp_forward.1} parent=11 // pred_fallthru
          _
        // Predicated region
        $region25: #{mlp_forward.1} parent=11 // pred_check
          %p222 = pneg %p130
        $region26: #{mlp_forward.1} parent=11 // pred_check_branch
          %224 = sbr.rel (%p222) target = $region28
        $region27: #{mlp_forward.1} parent=11 // pred_region
          _
        $region28: #{mlp_forward.1} parent=11 // pred_fallthru
          _
        // Predicated region
        $region29: #{mlp_forward.1} parent=11 // pred_check
          %p225 = pneg %p151
        $region30: #{mlp_forward.1} parent=11 // pred_check_branch
          %227 = sbr.rel (%p225) target = $region32
        $region31: #{mlp_forward.1} parent=11 // pred_region
          _
        $region32: #{mlp_forward.1} parent=11 // pred_fallthru
          _
        // Predicated region
        $region33: #{mlp_forward.1} parent=11 // pred_check
          %p228 = pneg %p172
        $region34: #{mlp_forward.1} parent=11 // pred_check_branch
          %230 = sbr.rel (%p228) target = $region36
        $region35: #{mlp_forward.1} parent=11 // pred_region
          _
        $region36: #{mlp_forward.1} parent=11 // pred_fallthru
          _
      $region12: #{mlp_forward.1} parent=5 // pred_fallthru
        _
      %p231 = scmp.lt.s32.totalorder %s20, 8
      // Predicated region
      $region37: #{mlp_forward.1} parent=5 // pred_check
        %p232 = pneg %p231
      $region38: #{mlp_forward.1} parent=5 // pred_check_branch
        %234 = sbr.rel (%p232) target = $region40
      $region39: #{mlp_forward.1} parent=5 // pred_region
        // Predicated region
        $region41: #{mlp_forward.1} parent=39 // pred_check
          %p235 = pneg %p40
        $region42: #{mlp_forward.1} parent=39 // pred_check_branch
          %237 = sbr.rel (%p235) target = $region44
        $region43: #{mlp_forward.1} parent=39 // pred_region
          %s238 = smul.u32 16, %s20
          %s239 = ssub.s32 125, %s238
          %p240 = scmp.lt.s32.totalorder %s239, 16
          %s241 = scalar_select %p240, %s239, 16
          %s242 = smul.u32 128, %s241
          %p243 = scmp.lt.s32.totalorder %s238, 124
          %s244 = scalar_select %p243, %s238, 124
          %s245 = smul.addr %s244, 8
          %s246 = scalar_lea.vmem %s1, %s245
          %s247 = smul.u32 16, %s20
          %s248 = ssub.s32 125, %s247
          %p249 = scmp.lt.s32.totalorder %s248, 16
          %s250 = scalar_select %p249, %s248, 16
          %s251 = smul.u32 128, %s250
        $region44: #{mlp_forward.1} parent=39 // pred_fallthru
          _
      $region40: #{mlp_forward.1} parent=5 // pred_fallthru
        _
      %p252 = scmp.le.s32.totalorder 1, %s20
      %p253 = scmp.lt.s32.totalorder %s20, 9
      %p254 = pnand %p252, %p253
      %p255 = pneg %p254
      // Predicated region
      $region45: #{mlp_forward.1} parent=5 // pred_check
        _
      $region46: #{mlp_forward.1} parent=5 // pred_check_branch
        %257 = sbr.rel (%p254) target = $region48
      $region47: #{mlp_forward.1} parent=5 // pred_region
        %s258 = ssub.s32 %s20, 1
        %s259 = smul.u32 16, %s25
        %s260 = ssub.s32 125, %s259
        %p261 = scmp.lt.s32.totalorder %s260, 16
        %s262 = scalar_select %p261, %s260, 16
        %s263 = smul.u32 128, %s262
        %p264 = scmp.lt.s32.totalorder %s259, 124
        %s265 = scalar_select %p264, %s259, 124
        %s266 = smul.addr %s265, 8
        %s267 = scalar_lea.vmem %s1, %s266
        %p268 = pneg %p46
        %p269 = pneg %p43
        %p270 = pneg %p67
        %p271 = pneg %p64
        %p272 = pneg %p88
        %p273 = pneg %p85
        %p274 = pneg %p109
        %p275 = pneg %p106
        %p276 = pneg %p130
        %p277 = pneg %p127
        %p278 = pneg %p151
        %p279 = pneg %p148
        %p280 = pneg %p172
        %p281 = pneg %p169
        %p282 = pneg %p198
        %p283 = pneg %p195
        %s284 = sand.u32 %s185, 1
        %s285 = sand.u32 %s185, 1
        %s286 = smul.addr %s285, 128
        %s287 = scalar_lea.vmem [#allocation4], %s286
        %s288 = smul.u32 16, %s25
        %s289 = ssub.s32 125, %s288
        %p290 = scmp.lt.s32.totalorder %s289, 16
        %s291 = scalar_select %p290, %s289, 16
        %s292 = smul.u32 128, %s291
        %p293 = scmp.lt.s32.totalorder %s288, 124
        %s294 = scalar_select %p293, %s288, 124
        %s295 = smul.addr %s294, 8
        %s296 = scalar_lea.vmem %s1, %s295
        %s297 = smul.u32 16, %s25
        %s298 = ssub.s32 125, %s297
        %p299 = scmp.lt.s32.totalorder %s298, 16
        %s300 = scalar_select %p299, %s298, 16
        %s301 = smul.u32 128, %s300
        %s302 = smul.u32 16, %s25
        %s303 = ssub.s32 125, %s302
        %p304 = scmp.lt.s32.totalorder %s303, 16
        %s305 = scalar_select %p304, %s303, 16
        %s306 = smul.u32 128, %s305
        %v307 = vld [vmem:[%s296] sm:$0xff]
        %v308 = vld [vmem:[%s296 + $0x8] sm:$0xff]
        %v309 = vld [vmem:[%s296 + $0x10] sm:$0xff]
        %v310 = vld [vmem:[%s296 + $0x18] sm:$0xff]
        %v311 = vld [vmem:[%s296 + $0x20] sm:$0xff]
        %v312 = vld [vmem:[%s296 + $0x28] sm:$0xff]
        %v313 = vld [vmem:[%s296 + $0x30] sm:$0xff]
        %v314 = vld [vmem:[%s296 + $0x38] sm:$0xff]
        %v315 = vld [vmem:[%s296 + $0x40] sm:$0xff]
        %v316 = vld [vmem:[%s296 + $0x48] sm:$0xff]
        %v317 = vld [vmem:[%s296 + $0x50] sm:$0xff]
        %v318 = vld [vmem:[%s296 + $0x58] sm:$0xff]
        %v319 = vld [vmem:[%s296 + $0x60] sm:$0xff]
        %v320 = vld [vmem:[%s296 + $0x68] sm:$0xff]
        %v321 = vld [vmem:[%s296 + $0x70] sm:$0xff]
        %v322 = vld [vmem:[%s296 + $0x78] sm:$0xff]
        %v323 = vld [vmem:[%s2] sm:$0xff]
        %v324 = vld [vmem:[%s2 + $0x8] sm:$0xff]
        %v325 = vld [vmem:[%s2 + $0x10] sm:$0xff]
        %v326 = vld [vmem:[%s2 + $0x18] sm:$0xff]
        %v327 = vld [vmem:[%s2 + $0x20] sm:$0xff]
        %v328 = vld [vmem:[%s2 + $0x28] sm:$0xff]
        %v329 = vld [vmem:[%s2 + $0x30] sm:$0xff]
        %v330 = vld [vmem:[%s2 + $0x38] sm:$0xff]
        %v331 = vld [vmem:[%s3] sm:$0x3]
        %v333 = vlaneseq
        %v334 = vshrl.u32 %v333, 7
        %v335 = vsub.s32 0, %v334
        %v336 = vrot.slane %v331, %v335
        %v337 = vlaneseq
        %v338 = vshrl.u32 %v337, 7
        %v339 = vsub.s32 1, %v338
        %v340 = vrot.slane %v331, %v339
        %vm343 = vcmask 261120
        %v345 = vsel %vm343, %v307, 0
        %v348 = vsel %vm343, %v308, 0
        %v351 = vsel %vm343, %v309, 0
        %v354 = vsel %vm343, %v310, 0
        %v357 = vsel %vm343, %v311, 0
        %v360 = vsel %vm343, %v312, 0
        %v363 = vsel %vm343, %v313, 0
        %v366 = vsel %vm343, %v314, 0
        %v369 = vsel %vm343, %v315, 0
        %v372 = vsel %vm343, %v316, 0
        %v375 = vsel %vm343, %v317, 0
        %v378 = vsel %vm343, %v318, 0
        %v381 = vsel %vm343, %v319, 0
        %v384 = vsel %vm343, %v320, 0
        %v387 = vsel %vm343, %v321, 0
        %v390 = vsel %vm343, %v322, 0
        %392 = vmatprep.subr.mxu0 %v324
        %393 = vmatpush1.msra.mxu0 %v323
        %394 = vmatprep.subr.mxu0 %v326
        %395 = vmatpush1.msra.mxu0 %v325
        %396 = vmatprep.subr.mxu0 %v328
        %397 = vmatpush1.msra.mxu0 %v327
        %398 = vmatprep.subr.mxu0 %v330
        %399 = vmatpush1.msra.mxu0 %v329
        %400 = vmatprep.subr.mxu0 0.0
        %401 = vmatpush1.msra.mxu0 0.0
        %402 = vmatprep.subr.mxu0 0.0
        %403 = vmatpush1.msra.mxu0 0.0
        %404 = vmatprep.subr.mxu0 0.0
        %405 = vmatpush1.msra.mxu0 0.0
        %406 = vmatprep.subr.mxu0 0.0
        %407 = vmatpush1.msra.mxu0 0.0
        %408 = vmatprep.subr.mxu0 0.0
        %409 = vmatpush1.msra.mxu0 0.0
        %410 = vmatprep.subr.mxu0 0.0
        %411 = vmatpush1.msra.mxu0 0.0
        %412 = vmatprep.subr.mxu0 0.0
        %413 = vmatpush1.msra.mxu0 0.0
        %414 = vmatprep.subr.mxu0 0.0
        %415 = vmatpush1.msra.mxu0 0.0
        %416 = vmatprep.subr.mxu0 0.0
        %417 = vmatpush1.msra.mxu0 0.0
        %418 = vmatprep.subr.mxu0 0.0
        %419 = vmatpush1.msra.mxu0 0.0
        %420 = vmatprep.subr.mxu0 0.0
        %421 = vmatpush1.msra.mxu0 0.0
        %422 = vmatprep.subr.mxu0 0.0
        %423 = vmatpush1.msra.mxu0 0.0
        %424 = vmatprep.subr.mxu0 0.0
        %425 = vmatpush1.msra.mxu0 0.0
        %426 = vmatprep.subr.mxu0 0.0
        %427 = vmatpush1.msra.mxu0 0.0
        %428 = vmatprep.subr.mxu0 0.0
        %429 = vmatpush1.msra.mxu0 0.0
        %430 = vmatprep.subr.mxu0 0.0
        %431 = vmatpush1.msra.mxu0 0.0
        %432 = vmatprep.subr.mxu0 0.0
        %433 = vmatpush1.msra.mxu0 0.0
        %434 = vmatprep.subr.mxu0 0.0
        %435 = vmatpush1.msra.mxu0 0.0
        %436 = vmatprep.subr.mxu0 0.0
        %437 = vmatpush1.msra.mxu0 0.0
        %438 = vmatprep.subr.mxu0 0.0
        %439 = vmatpush1.msra.mxu0 0.0
        %440 = vmatprep.subr.mxu0 0.0
        %441 = vmatpush1.msra.mxu0 0.0
        %442 = vmatprep.subr.mxu0 0.0
        %443 = vmatpush1.msra.mxu0 0.0
        %444 = vmatprep.subr.mxu0 0.0
        %445 = vmatpush1.msra.mxu0 0.0
        %446 = vmatprep.subr.mxu0 0.0
        %447 = vmatpush1.msra.mxu0 0.0
        %448 = vmatprep.subr.mxu0 0.0
        %449 = vmatpush1.msra.mxu0 0.0
        %450 = vmatprep.subr.mxu0 0.0
        %451 = vmatpush1.msra.mxu0 0.0
        %452 = vmatprep.subr.mxu0 0.0
        %453 = vmatpush1.msra.mxu0 0.0
        %454 = vmatprep.subr.mxu0 0.0
        %455 = vmatpush1.msra.mxu0 0.0
        %456 = vmatprep.mubr.f32.mxu0 0.0
        %457 = vmatmul.mubr.f32.gmra.mrb[0].mxu0 %v345
        %v458 = vpop.f32.mrb[0].mxu0
        %v459 = vadd.f32 %v336, %v458
        %v460 = vpop.f32.mrb[0].mxu0
        %v461 = vadd.f32 %v340, %v460
        %462 = vmatprep.mubr.f32.mxu0 0.0
        %463 = vmatmul.mubr.f32.gmra.mrb[0].mxu0 %v348
        %v464 = vpop.f32.mrb[0].mxu0
        %v465 = vadd.f32 %v336, %v464
        %v466 = vpop.f32.mrb[0].mxu0
        %v467 = vadd.f32 %v340, %v466
        %468 = vmatprep.mubr.f32.mxu0 0.0
        %469 = vmatmul.mubr.f32.gmra.mrb[0].mxu0 %v351
        %v470 = vpop.f32.mrb[0].mxu0
        %v471 = vadd.f32 %v336, %v470
        %v472 = vpop.f32.mrb[0].mxu0
        %v473 = vadd.f32 %v340, %v472
        %474 = vmatprep.mubr.f32.mxu0 0.0
        %475 = vmatmul.mubr.f32.gmra.mrb[0].mxu0 %v354
        %v476 = vpop.f32.mrb[0].mxu0
        %v477 = vadd.f32 %v336, %v476
        %v478 = vpop.f32.mrb[0].mxu0
        %v479 = vadd.f32 %v340, %v478
        %480 = vmatprep.mubr.f32.mxu0 0.0
        %481 = vmatmul.mubr.f32.gmra.mrb[0].mxu0 %v357
        %v482 = vpop.f32.mrb[0].mxu0
        %v483 = vadd.f32 %v336, %v482
        %v484 = vpop.f32.mrb[0].mxu0
        %v485 = vadd.f32 %v340, %v484
        %486 = vmatprep.mubr.f32.mxu0 0.0
        %487 = vmatmul.mubr.f32.gmra.mrb[0].mxu0 %v360
        %v488 = vpop.f32.mrb[0].mxu0
        %v489 = vadd.f32 %v336, %v488
        %v490 = vpop.f32.mrb[0].mxu0
        %v491 = vadd.f32 %v340, %v490
        %492 = vmatprep.mubr.f32.mxu0 0.0
        %493 = vmatmul.mubr.f32.gmra.mrb[0].mxu0 %v363
        %v494 = vpop.f32.mrb[0].mxu0
        %v495 = vadd.f32 %v336, %v494
        %v496 = vpop.f32.mrb[0].mxu0
        %v497 = vadd.f32 %v340, %v496
        %498 = vmatprep.mubr.f32.mxu0 0.0
        %499 = vmatmul.mubr.f32.gmra.mrb[0].mxu0 %v366
        %v500 = vpop.f32.mrb[0].mxu0
        %v501 = vadd.f32 %v336, %v500
        %v502 = vpop.f32.mrb[0].mxu0
        %v503 = vadd.f32 %v340, %v502
        %504 = vmatprep.mubr.f32.mxu0 0.0
        %505 = vmatmul.mubr.f32.gmra.mrb[0].mxu0 %v369
        %v506 = vpop.f32.mrb[0].mxu0
        %v507 = vadd.f32 %v336, %v506
        %v508 = vpop.f32.mrb[0].mxu0
        %v509 = vadd.f32 %v340, %v508
        %510 = vmatprep.mubr.f32.mxu0 0.0
        %511 = vmatmul.mubr.f32.gmra.mrb[0].mxu0 %v372
        %v512 = vpop.f32.mrb[0].mxu0
        %v513 = vadd.f32 %v336, %v512
        %v514 = vpop.f32.mrb[0].mxu0
        %v515 = vadd.f32 %v340, %v514
        %516 = vmatprep.mubr.f32.mxu0 0.0
        %517 = vmatmul.mubr.f32.gmra.mrb[0].mxu0 %v375
        %v518 = vpop.f32.mrb[0].mxu0
        %v519 = vadd.f32 %v336, %v518
        %v520 = vpop.f32.mrb[0].mxu0
        %v521 = vadd.f32 %v340, %v520
        %522 = vmatprep.mubr.f32.mxu0 0.0
        %523 = vmatmul.mubr.f32.gmra.mrb[0].mxu0 %v378
        %v524 = vpop.f32.mrb[0].mxu0
        %v525 = vadd.f32 %v336, %v524
        %v526 = vpop.f32.mrb[0].mxu0
        %v527 = vadd.f32 %v340, %v526
        %528 = vmatprep.mubr.f32.mxu0 0.0
        %529 = vmatmul.mubr.f32.gmra.mrb[0].mxu0 %v381
        %v530 = vpop.f32.mrb[0].mxu0
        %v531 = vadd.f32 %v336, %v530
        %v532 = vpop.f32.mrb[0].mxu0
        %v533 = vadd.f32 %v340, %v532
        %534 = vmatprep.mubr.f32.mxu0 0.0
        %535 = vmatmul.mubr.f32.gmra.mrb[0].mxu0 %v384
        %v536 = vpop.f32.mrb[0].mxu0
        %v537 = vadd.f32 %v336, %v536
        %v538 = vpop.f32.mrb[0].mxu0
        %v539 = vadd.f32 %v340, %v538
        %540 = vmatprep.mubr.f32.mxu0 0.0
        %541 = vmatmul.mubr.f32.gmra.mrb[0].mxu0 %v387
        %v542 = vpop.f32.mrb[0].mxu0
        %v543 = vadd.f32 %v336, %v542
        %v544 = vpop.f32.mrb[0].mxu0
        %v545 = vadd.f32 %v340, %v544
        %546 = vmatprep.mubr.f32.mxu0 0.0
        %547 = vmatmul.mubr.f32.gmra.mrb[0].mxu0 %v390
        %v548 = vpop.f32.mrb[0].mxu0
        %v549 = vadd.f32 %v336, %v548
        %v550 = vpop.f32.mrb[0].mxu0
        %v551 = vadd.f32 %v340, %v550
        %552 = vdwg.mxu0
        %vm553 = vcmp.gt.f32.partialorder %v459, 0.0
        %vm554 = vcmp.gt.f32.partialorder %v465, 0.0
        %vm555 = vcmp.gt.f32.partialorder %v471, 0.0
        %vm556 = vcmp.gt.f32.partialorder %v477, 0.0
        %vm557 = vcmp.gt.f32.partialorder %v483, 0.0
        %vm558 = vcmp.gt.f32.partialorder %v489, 0.0
        %vm559 = vcmp.gt.f32.partialorder %v495, 0.0
        %vm560 = vcmp.gt.f32.partialorder %v501, 0.0
        %vm561 = vcmp.gt.f32.partialorder %v507, 0.0
        %vm562 = vcmp.gt.f32.partialorder %v513, 0.0
        %vm563 = vcmp.gt.f32.partialorder %v519, 0.0
        %vm564 = vcmp.gt.f32.partialorder %v525, 0.0
        %vm565 = vcmp.gt.f32.partialorder %v531, 0.0
        %vm566 = vcmp.gt.f32.partialorder %v537, 0.0
        %vm567 = vcmp.gt.f32.partialorder %v543, 0.0
        %vm568 = vcmp.gt.f32.partialorder %v549, 0.0
        %s569 = sld [smem:[#allocation3]]
        %v570 = vstv %s569
        %v571 = vmul.f32 %v570, %v459
        %v572 = vmul.f32 %v570, %v465
        %v573 = vmul.f32 %v570, %v471
        %v574 = vmul.f32 %v570, %v477
        %v575 = vmul.f32 %v570, %v483
        %v576 = vmul.f32 %v570, %v489
        %v577 = vmul.f32 %v570, %v495
        %v578 = vmul.f32 %v570, %v501
        %v579 = vmul.f32 %v570, %v507
        %v580 = vmul.f32 %v570, %v513
        %v581 = vmul.f32 %v570, %v519
        %v582 = vmul.f32 %v570, %v525
        %v583 = vmul.f32 %v570, %v531
        %v584 = vmul.f32 %v570, %v537
        %v585 = vmul.f32 %v570, %v543
        %v586 = vmul.f32 %v570, %v549
        %v587 = vsel %vm553, %v459, %v571
        %v588 = vsel %vm554, %v465, %v572
        %v589 = vsel %vm555, %v471, %v573
        %v590 = vsel %vm556, %v477, %v574
        %v591 = vsel %vm557, %v483, %v575
        %v592 = vsel %vm558, %v489, %v576
        %v593 = vsel %vm559, %v495, %v577
        %v594 = vsel %vm560, %v501, %v578
        %v595 = vsel %vm561, %v507, %v579
        %v596 = vsel %vm562, %v513, %v580
        %v597 = vsel %vm563, %v519, %v581
        %v598 = vsel %vm564, %v525, %v582
        %v599 = vsel %vm565, %v531, %v583
        %v600 = vsel %vm566, %v537, %v584
        %v601 = vsel %vm567, %v543, %v585
        %v602 = vsel %vm568, %v549, %v586
        %v603 = vld [vmem:[%s4] sm:$0xff]
        %v604 = vld [vmem:[%s4 + $0x8] sm:$0xff]
        %v605 = vld [vmem:[%s4 + $0x10] sm:$0xff]
        %v606 = vld [vmem:[%s4 + $0x18] sm:$0xff]
        %v607 = vld [vmem:[%s4 + $0x20] sm:$0xff]
        %v608 = vld [vmem:[%s4 + $0x28] sm:$0xff]
        %v609 = vld [vmem:[%s4 + $0x30] sm:$0xff]
        %v610 = vld [vmem:[%s4 + $0x38] sm:$0xff]
        %v611 = vld [vmem:[%s4 + $0x40] sm:$0xff]
        %v612 = vld [vmem:[%s4 + $0x48] sm:$0xff]
        %v613 = vld [vmem:[%s4 + $0x50] sm:$0xff]
        %v614 = vld [vmem:[%s4 + $0x58] sm:$0xff]
        %v615 = vld [vmem:[%s4 + $0x60] sm:$0xff]
        %v616 = vld [vmem:[%s4 + $0x68] sm:$0xff]
        %v617 = vld [vmem:[%s4 + $0x70] sm:$0xff]
        %v618 = vld [vmem:[%s4 + $0x78] sm:$0xff]
        %v619 = vld [vmem:[%s5] sm:$0x1]
        %v621 = vlaneseq
        %v622 = vshrl.u32 %v621, 7
        %v623 = vsub.s32 0, %v622
        %v624 = vrot.slane %v619, %v623
        %626 = vmatprep.subr.mxu0 0.0
        %627 = vmatpush1.msra.mxu0 %v603
        %628 = vmatprep.subr.mxu0 0.0
        %629 = vmatpush1.msra.mxu0 %v604
        %630 = vmatprep.subr.mxu0 0.0
        %631 = vmatpush1.msra.mxu0 %v605
        %632 = vmatprep.subr.mxu0 0.0
        %633 = vmatpush1.msra.mxu0 %v606
        %634 = vmatprep.subr.mxu0 0.0
        %635 = vmatpush1.msra.mxu0 %v607
        %636 = vmatprep.subr.mxu0 0.0
        %637 = vmatpush1.msra.mxu0 %v608
        %638 = vmatprep.subr.mxu0 0.0
        %639 = vmatpush1.msra.mxu0 %v609
        %640 = vmatprep.subr.mxu0 0.0
        %641 = vmatpush1.msra.mxu0 %v610
        %642 = vmatprep.subr.mxu0 0.0
        %643 = vmatpush1.msra.mxu0 %v611
        %644 = vmatprep.subr.mxu0 0.0
        %645 = vmatpush1.msra.mxu0 %v612
        %646 = vmatprep.subr.mxu0 0.0
        %647 = vmatpush1.msra.mxu0 %v613
        %648 = vmatprep.subr.mxu0 0.0
        %649 = vmatpush1.msra.mxu0 %v614
        %650 = vmatprep.subr.mxu0 0.0
        %651 = vmatpush1.msra.mxu0 %v615
        %652 = vmatprep.subr.mxu0 0.0
        %653 = vmatpush1.msra.mxu0 %v616
        %654 = vmatprep.subr.mxu0 0.0
        %655 = vmatpush1.msra.mxu0 %v617
        %656 = vmatprep.subr.mxu0 0.0
        %657 = vmatpush1.msra.mxu0 %v618
        %658 = vmatprep.subr.mxu0 0.0
        %659 = vmatpush1.msra.mxu0 0.0
        %660 = vmatprep.subr.mxu0 0.0
        %661 = vmatpush1.msra.mxu0 0.0
        %662 = vmatprep.subr.mxu0 0.0
        %663 = vmatpush1.msra.mxu0 0.0
        %664 = vmatprep.subr.mxu0 0.0
        %665 = vmatpush1.msra.mxu0 0.0
        %666 = vmatprep.subr.mxu0 0.0
        %667 = vmatpush1.msra.mxu0 0.0
        %668 = vmatprep.subr.mxu0 0.0
        %669 = vmatpush1.msra.mxu0 0.0
        %670 = vmatprep.subr.mxu0 0.0
        %671 = vmatpush1.msra.mxu0 0.0
        %672 = vmatprep.subr.mxu0 0.0
        %673 = vmatpush1.msra.mxu0 0.0
        %674 = vmatprep.subr.mxu0 0.0
        %675 = vmatpush1.msra.mxu0 0.0
        %676 = vmatprep.subr.mxu0 0.0
        %677 = vmatpush1.msra.mxu0 0.0
        %678 = vmatprep.subr.mxu0 0.0
        %679 = vmatpush1.msra.mxu0 0.0
        %680 = vmatprep.subr.mxu0 0.0
        %681 = vmatpush1.msra.mxu0 0.0
        %682 = vmatprep.subr.mxu0 0.0
        %683 = vmatpush1.msra.mxu0 0.0
        %684 = vmatprep.subr.mxu0 0.0
        %685 = vmatpush1.msra.mxu0 0.0
        %686 = vmatprep.subr.mxu0 0.0
        %687 = vmatpush1.msra.mxu0 0.0
        %688 = vmatprep.subr.mxu0 0.0
        %689 = vmatpush1.msra.mxu0 0.0
        %690 = vmatprep.mubr.f32.mxu0 0.0
        %691 = vmatmul.mubr.f32.gmra.mrb[0].mxu0 %v587
        %v692 = vpop.f32.mrb[0].mxu0
        %v693 = vadd.f32 %v624, %v692
        %v694 = vpop.f32.mrb[0].mxu0
        %695 = vmatprep.mubr.f32.mxu0 0.0
        %696 = vmatmul.mubr.f32.gmra.mrb[0].mxu0 %v588
        %v697 = vpop.f32.mrb[0].mxu0
        %v698 = vadd.f32 %v624, %v697
        %v699 = vpop.f32.mrb[0].mxu0
        %700 = vmatprep.mubr.f32.mxu0 0.0
        %701 = vmatmul.mubr.f32.gmra.mrb[0].mxu0 %v589
        %v702 = vpop.f32.mrb[0].mxu0
        %v703 = vadd.f32 %v624, %v702
        %v704 = vpop.f32.mrb[0].mxu0
        %705 = vmatprep.mubr.f32.mxu0 0.0
        %706 = vmatmul.mubr.f32.gmra.mrb[0].mxu0 %v590
        %v707 = vpop.f32.mrb[0].mxu0
        %v708 = vadd.f32 %v624, %v707
        %v709 = vpop.f32.mrb[0].mxu0
        %710 = vmatprep.mubr.f32.mxu0 0.0
        %711 = vmatmul.mubr.f32.gmra.mrb[0].mxu0 %v591
        %v712 = vpop.f32.mrb[0].mxu0
        %v713 = vadd.f32 %v624, %v712
        %v714 = vpop.f32.mrb[0].mxu0
        %715 = vmatprep.mubr.f32.mxu0 0.0
        %716 = vmatmul.mubr.f32.gmra.mrb[0].mxu0 %v592
        %v717 = vpop.f32.mrb[0].mxu0
        %v718 = vadd.f32 %v624, %v717
        %v719 = vpop.f32.mrb[0].mxu0
        %720 = vmatprep.mubr.f32.mxu0 0.0
        %721 = vmatmul.mubr.f32.gmra.mrb[0].mxu0 %v593
        %v722 = vpop.f32.mrb[0].mxu0
        %v723 = vadd.f32 %v624, %v722
        %v724 = vpop.f32.mrb[0].mxu0
        %725 = vmatprep.mubr.f32.mxu0 0.0
        %726 = vmatmul.mubr.f32.gmra.mrb[0].mxu0 %v594
        %v727 = vpop.f32.mrb[0].mxu0
        %v728 = vadd.f32 %v624, %v727
        %v729 = vpop.f32.mrb[0].mxu0
        %730 = vmatprep.mubr.f32.mxu0 0.0
        %731 = vmatmul.mubr.f32.gmra.mrb[0].mxu0 %v595
        %v732 = vpop.f32.mrb[0].mxu0
        %v733 = vadd.f32 %v624, %v732
        %v734 = vpop.f32.mrb[0].mxu0
        %735 = vmatprep.mubr.f32.mxu0 0.0
        %736 = vmatmul.mubr.f32.gmra.mrb[0].mxu0 %v596
        %v737 = vpop.f32.mrb[0].mxu0
        %v738 = vadd.f32 %v624, %v737
        %v739 = vpop.f32.mrb[0].mxu0
        %740 = vmatprep.mubr.f32.mxu0 0.0
        %741 = vmatmul.mubr.f32.gmra.mrb[0].mxu0 %v597
        %v742 = vpop.f32.mrb[0].mxu0
        %v743 = vadd.f32 %v624, %v742
        %v744 = vpop.f32.mrb[0].mxu0
        %745 = vmatprep.mubr.f32.mxu0 0.0
        %746 = vmatmul.mubr.f32.gmra.mrb[0].mxu0 %v598
        %v747 = vpop.f32.mrb[0].mxu0
        %v748 = vadd.f32 %v624, %v747
        %v749 = vpop.f32.mrb[0].mxu0
        %750 = vmatprep.mubr.f32.mxu0 0.0
        %751 = vmatmul.mubr.f32.gmra.mrb[0].mxu0 %v599
        %v752 = vpop.f32.mrb[0].mxu0
        %v753 = vadd.f32 %v624, %v752
        %v754 = vpop.f32.mrb[0].mxu0
        %755 = vmatprep.mubr.f32.mxu0 0.0
        %756 = vmatmul.mubr.f32.gmra.mrb[0].mxu0 %v600
        %v757 = vpop.f32.mrb[0].mxu0
        %v758 = vadd.f32 %v624, %v757
        %v759 = vpop.f32.mrb[0].mxu0
        %760 = vmatprep.mubr.f32.mxu0 0.0
        %761 = vmatmul.mubr.f32.gmra.mrb[0].mxu0 %v601
        %v762 = vpop.f32.mrb[0].mxu0
        %v763 = vadd.f32 %v624, %v762
        %v764 = vpop.f32.mrb[0].mxu0
        %765 = vmatprep.mubr.f32.mxu0 0.0
        %766 = vmatmul.mubr.f32.gmra.mrb[0].mxu0 %v602
        %v767 = vpop.f32.mrb[0].mxu0
        %v768 = vadd.f32 %v624, %v767
        %v769 = vpop.f32.mrb[0].mxu0
        %770 = vdwg.mxu0
        %vm771 = vcmp.gt.f32.partialorder %v693, 0.0
        %vm772 = vcmp.gt.f32.partialorder %v698, 0.0
        %vm773 = vcmp.gt.f32.partialorder %v703, 0.0
        %vm774 = vcmp.gt.f32.partialorder %v708, 0.0
        %vm775 = vcmp.gt.f32.partialorder %v713, 0.0
        %vm776 = vcmp.gt.f32.partialorder %v718, 0.0
        %vm777 = vcmp.gt.f32.partialorder %v723, 0.0
        %vm778 = vcmp.gt.f32.partialorder %v728, 0.0
        %vm779 = vcmp.gt.f32.partialorder %v733, 0.0
        %vm780 = vcmp.gt.f32.partialorder %v738, 0.0
        %vm781 = vcmp.gt.f32.partialorder %v743, 0.0
        %vm782 = vcmp.gt.f32.partialorder %v748, 0.0
        %vm783 = vcmp.gt.f32.partialorder %v753, 0.0
        %vm784 = vcmp.gt.f32.partialorder %v758, 0.0
        %vm785 = vcmp.gt.f32.partialorder %v763, 0.0
        %vm786 = vcmp.gt.f32.partialorder %v768, 0.0
        %s787 = sld [smem:[#allocation3 + $0x1]]
        %v788 = vstv %s787
        %v789 = vmul.f32 %v788, %v693
        %v790 = vmul.f32 %v788, %v698
        %v791 = vmul.f32 %v788, %v703
        %v792 = vmul.f32 %v788, %v708
        %v793 = vmul.f32 %v788, %v713
        %v794 = vmul.f32 %v788, %v718
        %v795 = vmul.f32 %v788, %v723
        %v796 = vmul.f32 %v788, %v728
        %v797 = vmul.f32 %v788, %v733
        %v798 = vmul.f32 %v788, %v738
        %v799 = vmul.f32 %v788, %v743
        %v800 = vmul.f32 %v788, %v748
        %v801 = vmul.f32 %v788, %v753
        %v802 = vmul.f32 %v788, %v758
        %v803 = vmul.f32 %v788, %v763
        %v804 = vmul.f32 %v788, %v768
        %v805 = vsel %vm771, %v693, %v789
        %v806 = vsel %vm772, %v698, %v790
        %v807 = vsel %vm773, %v703, %v791
        %v808 = vsel %vm774, %v708, %v792
        %v809 = vsel %vm775, %v713, %v793
        %v810 = vsel %vm776, %v718, %v794
        %v811 = vsel %vm777, %v723, %v795
        %v812 = vsel %vm778, %v728, %v796
        %v813 = vsel %vm779, %v733, %v797
        %v814 = vsel %vm780, %v738, %v798
        %v815 = vsel %vm781, %v743, %v799
        %v816 = vsel %vm782, %v748, %v800
        %v817 = vsel %vm783, %v753, %v801
        %v818 = vsel %vm784, %v758, %v802
        %v819 = vsel %vm785, %v763, %v803
        %v820 = vsel %vm786, %v768, %v804
        %v821 = vld [vmem:[%s6] sm:$0xff]
        %v822 = vld [vmem:[%s6 + $0x8] sm:$0xff]
        %v823 = vld [vmem:[%s6 + $0x10] sm:$0xff]
        %v824 = vld [vmem:[%s6 + $0x18] sm:$0xff]
        %v825 = vld [vmem:[%s6 + $0x20] sm:$0xff]
        %v826 = vld [vmem:[%s6 + $0x28] sm:$0xff]
        %v827 = vld [vmem:[%s6 + $0x30] sm:$0xff]
        %v828 = vld [vmem:[%s6 + $0x38] sm:$0xff]
        %v829 = vld [vmem:[%s6 + $0x40] sm:$0xff]
        %v830 = vld [vmem:[%s6 + $0x48] sm:$0xff]
        %v831 = vld [vmem:[%s6 + $0x50] sm:$0xff]
        %v832 = vld [vmem:[%s6 + $0x58] sm:$0xff]
        %v833 = vld [vmem:[%s6 + $0x60] sm:$0xff]
        %v834 = vld [vmem:[%s6 + $0x68] sm:$0xff]
        %v835 = vld [vmem:[%s6 + $0x70] sm:$0xff]
        %v836 = vld [vmem:[%s6 + $0x78] sm:$0xff]
        %v837 = vld [vmem:[%s7] sm:$0x1]
        %v839 = vlaneseq
        %v840 = vshrl.u32 %v839, 7
        %v841 = vsub.s32 0, %v840
        %v842 = vrot.slane %v837, %v841
        %844 = vmatprep.subr.mxu0 0.0
        %845 = vmatpush1.msra.mxu0 %v821
        %846 = vmatprep.subr.mxu0 0.0
        %847 = vmatpush1.msra.mxu0 %v822
        %848 = vmatprep.subr.mxu0 0.0
        %849 = vmatpush1.msra.mxu0 %v823
        %850 = vmatprep.subr.mxu0 0.0
        %851 = vmatpush1.msra.mxu0 %v824
        %852 = vmatprep.subr.mxu0 0.0
        %853 = vmatpush1.msra.mxu0 %v825
        %854 = vmatprep.subr.mxu0 0.0
        %855 = vmatpush1.msra.mxu0 %v826
        %856 = vmatprep.subr.mxu0 0.0
        %857 = vmatpush1.msra.mxu0 %v827
        %858 = vmatprep.subr.mxu0 0.0
        %859 = vmatpush1.msra.mxu0 %v828
        %860 = vmatprep.subr.mxu0 0.0
        %861 = vmatpush1.msra.mxu0 %v829
        %862 = vmatprep.subr.mxu0 0.0
        %863 = vmatpush1.msra.mxu0 %v830
        %864 = vmatprep.subr.mxu0 0.0
        %865 = vmatpush1.msra.mxu0 %v831
        %866 = vmatprep.subr.mxu0 0.0
        %867 = vmatpush1.msra.mxu0 %v832
        %868 = vmatprep.subr.mxu0 0.0
        %869 = vmatpush1.msra.mxu0 %v833
        %870 = vmatprep.subr.mxu0 0.0
        %871 = vmatpush1.msra.mxu0 %v834
        %872 = vmatprep.subr.mxu0 0.0
        %873 = vmatpush1.msra.mxu0 %v835
        %874 = vmatprep.subr.mxu0 0.0
        %875 = vmatpush1.msra.mxu0 %v836
        %876 = vmatprep.subr.mxu0 0.0
        %877 = vmatpush1.msra.mxu0 0.0
        %878 = vmatprep.subr.mxu0 0.0
        %879 = vmatpush1.msra.mxu0 0.0
        %880 = vmatprep.subr.mxu0 0.0
        %881 = vmatpush1.msra.mxu0 0.0
        %882 = vmatprep.subr.mxu0 0.0
        %883 = vmatpush1.msra.mxu0 0.0
        %884 = vmatprep.subr.mxu0 0.0
        %885 = vmatpush1.msra.mxu0 0.0
        %886 = vmatprep.subr.mxu0 0.0
        %887 = vmatpush1.msra.mxu0 0.0
        %888 = vmatprep.subr.mxu0 0.0
        %889 = vmatpush1.msra.mxu0 0.0
        %890 = vmatprep.subr.mxu0 0.0
        %891 = vmatpush1.msra.mxu0 0.0
        %892 = vmatprep.subr.mxu0 0.0
        %893 = vmatpush1.msra.mxu0 0.0
        %894 = vmatprep.subr.mxu0 0.0
        %895 = vmatpush1.msra.mxu0 0.0
        %896 = vmatprep.subr.mxu0 0.0
        %897 = vmatpush1.msra.mxu0 0.0
        %898 = vmatprep.subr.mxu0 0.0
        %899 = vmatpush1.msra.mxu0 0.0
        %900 = vmatprep.subr.mxu0 0.0
        %901 = vmatpush1.msra.mxu0 0.0
        %902 = vmatprep.subr.mxu0 0.0
        %903 = vmatpush1.msra.mxu0 0.0
        %904 = vmatprep.subr.mxu0 0.0
        %905 = vmatpush1.msra.mxu0 0.0
        %906 = vmatprep.subr.mxu0 0.0
        %907 = vmatpush1.msra.mxu0 0.0
        %908 = vmatprep.mubr.f32.mxu0 0.0
        %909 = vmatmul.mubr.f32.gmra.mrb[0].mxu0 %v805
        %v910 = vpop.f32.mrb[0].mxu0
        %v911 = vadd.f32 %v842, %v910
        %v912 = vpop.f32.mrb[0].mxu0
        %913 = vmatprep.mubr.f32.mxu0 0.0
        %914 = vmatmul.mubr.f32.gmra.mrb[0].mxu0 %v806
        %v915 = vpop.f32.mrb[0].mxu0
        %v916 = vadd.f32 %v842, %v915
        %v917 = vpop.f32.mrb[0].mxu0
        %918 = vmatprep.mubr.f32.mxu0 0.0
        %919 = vmatmul.mubr.f32.gmra.mrb[0].mxu0 %v807
        %v920 = vpop.f32.mrb[0].mxu0
        %v921 = vadd.f32 %v842, %v920
        %v922 = vpop.f32.mrb[0].mxu0
        %923 = vmatprep.mubr.f32.mxu0 0.0
        %924 = vmatmul.mubr.f32.gmra.mrb[0].mxu0 %v808
        %v925 = vpop.f32.mrb[0].mxu0
        %v926 = vadd.f32 %v842, %v925
        %v927 = vpop.f32.mrb[0].mxu0
        %928 = vmatprep.mubr.f32.mxu0 0.0
        %929 = vmatmul.mubr.f32.gmra.mrb[0].mxu0 %v809
        %v930 = vpop.f32.mrb[0].mxu0
        %v931 = vadd.f32 %v842, %v930
        %v932 = vpop.f32.mrb[0].mxu0
        %933 = vmatprep.mubr.f32.mxu0 0.0
        %934 = vmatmul.mubr.f32.gmra.mrb[0].mxu0 %v810
        %v935 = vpop.f32.mrb[0].mxu0
        %v936 = vadd.f32 %v842, %v935
        %v937 = vpop.f32.mrb[0].mxu0
        %938 = vmatprep.mubr.f32.mxu0 0.0
        %939 = vmatmul.mubr.f32.gmra.mrb[0].mxu0 %v811
        %v940 = vpop.f32.mrb[0].mxu0
        %v941 = vadd.f32 %v842, %v940
        %v942 = vpop.f32.mrb[0].mxu0
        %943 = vmatprep.mubr.f32.mxu0 0.0
        %944 = vmatmul.mubr.f32.gmra.mrb[0].mxu0 %v812
        %v945 = vpop.f32.mrb[0].mxu0
        %v946 = vadd.f32 %v842, %v945
        %v947 = vpop.f32.mrb[0].mxu0
        %948 = vmatprep.mubr.f32.mxu0 0.0
        %949 = vmatmul.mubr.f32.gmra.mrb[0].mxu0 %v813
        %v950 = vpop.f32.mrb[0].mxu0
        %v951 = vadd.f32 %v842, %v950
        %v952 = vpop.f32.mrb[0].mxu0
        %953 = vmatprep.mubr.f32.mxu0 0.0
        %954 = vmatmul.mubr.f32.gmra.mrb[0].mxu0 %v814
        %v955 = vpop.f32.mrb[0].mxu0
        %v956 = vadd.f32 %v842, %v955
        %v957 = vpop.f32.mrb[0].mxu0
        %958 = vmatprep.mubr.f32.mxu0 0.0
        %959 = vmatmul.mubr.f32.gmra.mrb[0].mxu0 %v815
        %v960 = vpop.f32.mrb[0].mxu0
        %v961 = vadd.f32 %v842, %v960
        %v962 = vpop.f32.mrb[0].mxu0
        %963 = vmatprep.mubr.f32.mxu0 0.0
        %964 = vmatmul.mubr.f32.gmra.mrb[0].mxu0 %v816
        %v965 = vpop.f32.mrb[0].mxu0
        %v966 = vadd.f32 %v842, %v965
        %v967 = vpop.f32.mrb[0].mxu0
        %968 = vmatprep.mubr.f32.mxu0 0.0
        %969 = vmatmul.mubr.f32.gmra.mrb[0].mxu0 %v817
        %v970 = vpop.f32.mrb[0].mxu0
        %v971 = vadd.f32 %v842, %v970
        %v972 = vpop.f32.mrb[0].mxu0
        %973 = vmatprep.mubr.f32.mxu0 0.0
        %974 = vmatmul.mubr.f32.gmra.mrb[0].mxu0 %v818
        %v975 = vpop.f32.mrb[0].mxu0
        %v976 = vadd.f32 %v842, %v975
        %v977 = vpop.f32.mrb[0].mxu0
        %978 = vmatprep.mubr.f32.mxu0 0.0
        %979 = vmatmul.mubr.f32.gmra.mrb[0].mxu0 %v819
        %v980 = vpop.f32.mrb[0].mxu0
        %v981 = vadd.f32 %v842, %v980
        %v982 = vpop.f32.mrb[0].mxu0
        %983 = vmatprep.mubr.f32.mxu0 0.0
        %984 = vmatmul.mubr.f32.gmra.mrb[0].mxu0 %v820
        %v985 = vpop.f32.mrb[0].mxu0
        %v986 = vadd.f32 %v842, %v985
        %v987 = vpop.f32.mrb[0].mxu0
        %988 = vdwg.mxu0
        %vm989 = vcmp.gt.f32.partialorder %v911, 0.0
        %vm990 = vcmp.gt.f32.partialorder %v916, 0.0
        %vm991 = vcmp.gt.f32.partialorder %v921, 0.0
        %vm992 = vcmp.gt.f32.partialorder %v926, 0.0
        %vm993 = vcmp.gt.f32.partialorder %v931, 0.0
        %vm994 = vcmp.gt.f32.partialorder %v936, 0.0
        %vm995 = vcmp.gt.f32.partialorder %v941, 0.0
        %vm996 = vcmp.gt.f32.partialorder %v946, 0.0
        %vm997 = vcmp.gt.f32.partialorder %v951, 0.0
        %vm998 = vcmp.gt.f32.partialorder %v956, 0.0
        %vm999 = vcmp.gt.f32.partialorder %v961, 0.0
        %vm1000 = vcmp.gt.f32.partialorder %v966, 0.0
        %vm1001 = vcmp.gt.f32.partialorder %v971, 0.0
        %vm1002 = vcmp.gt.f32.partialorder %v976, 0.0
        %vm1003 = vcmp.gt.f32.partialorder %v981, 0.0
        %vm1004 = vcmp.gt.f32.partialorder %v986, 0.0
        %s1005 = sld [smem:[#allocation3 + $0x2]]
        %v1006 = vstv %s1005
        %v1007 = vmul.f32 %v1006, %v911
        %v1008 = vmul.f32 %v1006, %v916
        %v1009 = vmul.f32 %v1006, %v921
        %v1010 = vmul.f32 %v1006, %v926
        %v1011 = vmul.f32 %v1006, %v931
        %v1012 = vmul.f32 %v1006, %v936
        %v1013 = vmul.f32 %v1006, %v941
        %v1014 = vmul.f32 %v1006, %v946
        %v1015 = vmul.f32 %v1006, %v951
        %v1016 = vmul.f32 %v1006, %v956
        %v1017 = vmul.f32 %v1006, %v961
        %v1018 = vmul.f32 %v1006, %v966
        %v1019 = vmul.f32 %v1006, %v971
        %v1020 = vmul.f32 %v1006, %v976
        %v1021 = vmul.f32 %v1006, %v981
        %v1022 = vmul.f32 %v1006, %v986
        %v1023 = vsel %vm989, %v911, %v1007
        %v1024 = vsel %vm990, %v916, %v1008
        %v1025 = vsel %vm991, %v921, %v1009
        %v1026 = vsel %vm992, %v926, %v1010
        %v1027 = vsel %vm993, %v931, %v1011
        %v1028 = vsel %vm994, %v936, %v1012
        %v1029 = vsel %vm995, %v941, %v1013
        %v1030 = vsel %vm996, %v946, %v1014
        %v1031 = vsel %vm997, %v951, %v1015
        %v1032 = vsel %vm998, %v956, %v1016
        %v1033 = vsel %vm999, %v961, %v1017
        %v1034 = vsel %vm1000, %v966, %v1018
        %v1035 = vsel %vm1001, %v971, %v1019
        %v1036 = vsel %vm1002, %v976, %v1020
        %v1037 = vsel %vm1003, %v981, %v1021
        %v1038 = vsel %vm1004, %v986, %v1022
        %v1039 = vadd.f32 %v1023, %v461
        %v1040 = vadd.f32 %v1024, %v467
        %v1041 = vadd.f32 %v1025, %v473
        %v1042 = vadd.f32 %v1026, %v479
        %v1043 = vadd.f32 %v1027, %v485
        %v1044 = vadd.f32 %v1028, %v491
        %v1045 = vadd.f32 %v1029, %v497
        %v1046 = vadd.f32 %v1030, %v503
        %v1047 = vadd.f32 %v1031, %v509
        %v1048 = vadd.f32 %v1032, %v515
        %v1049 = vadd.f32 %v1033, %v521
        %v1050 = vadd.f32 %v1034, %v527
        %v1051 = vadd.f32 %v1035, %v533
        %v1052 = vadd.f32 %v1036, %v539
        %v1053 = vadd.f32 %v1037, %v545
        %v1054 = vadd.f32 %v1038, %v551
        %vm1055 = vcmask 523264
        %1056 = vst.msk [vmem:[%s287] sm:$0xff] %vm1055, %v1039
        %1057 = vst.msk [vmem:[%s287 + $0x8] sm:$0xff] %vm1055, %v1040
        %1058 = vst.msk [vmem:[%s287 + $0x10] sm:$0xff] %vm1055, %v1041
        %1059 = vst.msk [vmem:[%s287 + $0x18] sm:$0xff] %vm1055, %v1042
        %1060 = vst.msk [vmem:[%s287 + $0x20] sm:$0xff] %vm1055, %v1043
        %1061 = vst.msk [vmem:[%s287 + $0x28] sm:$0xff] %vm1055, %v1044
        %1062 = vst.msk [vmem:[%s287 + $0x30] sm:$0xff] %vm1055, %v1045
        %1063 = vst.msk [vmem:[%s287 + $0x38] sm:$0xff] %vm1055, %v1046
        %1064 = vst.msk [vmem:[%s287 + $0x40] sm:$0xff] %vm1055, %v1047
        %1065 = vst.msk [vmem:[%s287 + $0x48] sm:$0xff] %vm1055, %v1048
        %1066 = vst.msk [vmem:[%s287 + $0x50] sm:$0xff] %vm1055, %v1049
        %1067 = vst.msk [vmem:[%s287 + $0x58] sm:$0xff] %vm1055, %v1050
        %1068 = vst.msk [vmem:[%s287 + $0x60] sm:$0xff] %vm1055, %v1051
        %1069 = vst.msk [vmem:[%s287 + $0x68] sm:$0xff] %vm1055, %v1052
        %1070 = vst.msk [vmem:[%s287 + $0x70] sm:$0xff] %vm1055, %v1053
        %1071 = vst.msk [vmem:[%s287 + $0x78] sm:$0xff] %vm1055, %v1054
        %s1072 = sand.u32 %s185, 1
        %s1073 = sand.u32 %s185, 1
        %s1074 = smul.addr %s1073, 128
        %s1075 = scalar_lea.vmem [#allocation4], %s1074
        // Predicated region
        $region49: #{mlp_forward.1} parent=47 // pred_check
          %p1076 = pneg %p195
        $region50: #{mlp_forward.1} parent=47 // pred_check_branch
          %1078 = sbr.rel (%p1076) target = $region52
        $region51: #{mlp_forward.1} parent=47 // pred_region
          %s1079 = smul.u32 16, %s25
          %s1080 = ssub.s32 125, %s1079
          %p1081 = scmp.lt.s32.totalorder %s1080, 16
          %s1082 = scalar_select %p1081, %s1080, 16
          %s1083 = smul.u32 128, %s1082
          %p1084 = scmp.ne.s32.totalorder 0, %s1083
          %s1085 = smul.addr %s1079, 8
          %s1086 = scalar_lea.vmem %s8, %s1085
          // Predicated region
          $region53: #{mlp_forward.1} parent=51 // pred_check
            %p1087 = pneg %p1084
          $region54: #{mlp_forward.1} parent=51 // pred_check_branch
            %1089 = sbr.rel (%p1087) target = $region56
          $region55: #{mlp_forward.1} parent=51 // pred_region
            // Predicated region
            $region57: #{mlp_forward.1} parent=55 // pred_check
              _
            $region58: #{mlp_forward.1} parent=55 // pred_check_branch
              %1091 = sbr.rel (0) target = $region60
            $region59: #{mlp_forward.1} parent=55 // pred_region
              // Predicated region
              $region79: #{mlp_forward.1} parent=59 // pred_check
                _
              $region80: #{mlp_forward.1} parent=59 // pred_check_branch
                %1170 = sbr.rel (0) target = $region82
              $region81: #{mlp_forward.1} parent=59 // pred_region
                %s1171 = sshrl.u32 %s1082, 4
                // While loop
                $region83: #{mlp_forward.1} parent=81 // loop_pre_header
                  _
                $region84: #{mlp_forward.1} parent=81 // loop_header
                  %s1173 = sphi 0, %s1175
                  %p1174 = scmp.ge.s32.totalorder %s1173, %s1171
                  %s1178 = sphi 0, %s1215
                  %s1179 = sphi %s1075, %s1218
                  %s1180 = sphi %s1086, %s1219
                $region85: #{mlp_forward.1} parent=81 // loop_header_branch
                  %1177 = sbr.rel (%p1174) target = $region89
                $region86: #{mlp_forward.1} parent=81 // loop_body
                  %v1181 = vld [vmem:[%s1179] sm:$0xff]
                  %1182 = vst [vmem:[%s1180] sm:$0xff] %v1181
                  %v1183 = vld [vmem:[%s1179 + $0x8] sm:$0xff]
                  %1184 = vst [vmem:[%s1180 + $0x8] sm:$0xff] %v1183
                  %v1185 = vld [vmem:[%s1179 + $0x10] sm:$0xff]
                  %1186 = vst [vmem:[%s1180 + $0x10] sm:$0xff] %v1185
                  %v1187 = vld [vmem:[%s1179 + $0x18] sm:$0xff]
                  %1188 = vst [vmem:[%s1180 + $0x18] sm:$0xff] %v1187
                  %v1189 = vld [vmem:[%s1179 + $0x20] sm:$0xff]
                  %1190 = vst [vmem:[%s1180 + $0x20] sm:$0xff] %v1189
                  %v1191 = vld [vmem:[%s1179 + $0x28] sm:$0xff]
                  %1192 = vst [vmem:[%s1180 + $0x28] sm:$0xff] %v1191
                  %v1193 = vld [vmem:[%s1179 + $0x30] sm:$0xff]
                  %1194 = vst [vmem:[%s1180 + $0x30] sm:$0xff] %v1193
                  %v1195 = vld [vmem:[%s1179 + $0x38] sm:$0xff]
                  %1196 = vst [vmem:[%s1180 + $0x38] sm:$0xff] %v1195
                  %v1197 = vld [vmem:[%s1179 + $0x40] sm:$0xff]
                  %1198 = vst [vmem:[%s1180 + $0x40] sm:$0xff] %v1197
                  %v1199 = vld [vmem:[%s1179 + $0x48] sm:$0xff]
                  %1200 = vst [vmem:[%s1180 + $0x48] sm:$0xff] %v1199
                  %v1201 = vld [vmem:[%s1179 + $0x50] sm:$0xff]
                  %1202 = vst [vmem:[%s1180 + $0x50] sm:$0xff] %v1201
                  %v1203 = vld [vmem:[%s1179 + $0x58] sm:$0xff]
                  %1204 = vst [vmem:[%s1180 + $0x58] sm:$0xff] %v1203
                  %v1205 = vld [vmem:[%s1179 + $0x60] sm:$0xff]
                  %1206 = vst [vmem:[%s1180 + $0x60] sm:$0xff] %v1205
                  %v1207 = vld [vmem:[%s1179 + $0x68] sm:$0xff]
                  %1208 = vst [vmem:[%s1180 + $0x68] sm:$0xff] %v1207
                  %v1209 = vld [vmem:[%s1179 + $0x70] sm:$0xff]
                  %1210 = vst [vmem:[%s1180 + $0x70] sm:$0xff] %v1209
                  %v1211 = vld [vmem:[%s1179 + $0x78] sm:$0xff]
                  %1212 = vst [vmem:[%s1180 + $0x78] sm:$0xff] %v1211
                  %s1213 = sadd.s32 1, %s1178
                  %p1214 = scmp.ge.s32.totalorder %s1213, %s1171
                  %s1215 = scalar_select %p1214, 0, %s1213
                  %s1216 = smul.u32 %s1215, 128
                  %s1217 = smul.u32 %s1215, 128
                  %s1218 = scalar_lea.vmem %s1075, %s1216 [#allocation4]
                  %s1219 = scalar_lea.vmem %s1086, %s1217
                $region87: #{mlp_forward.1} parent=81 // loop_footer
                  %s1175 = sadd.s32 %s1173, 1
                $region88: #{mlp_forward.1} parent=81 // loop_footer_branch
                  %1172 = sbr.rel target = $region84
                $region89: #{mlp_forward.1} parent=81 // loop_exit
                  _
                %s1220 = sshrl.u32 %s1082, 4
                %s1221 = sand.u32 %s1082, 15
                %s1222 = smul.u32 %s1220, 16
                %s1223 = smul.u32 8, %s1222
                %s1224 = scalar_lea.vmem %s1075, %s1223 [#allocation4]
                %s1225 = smul.u32 8, %s1222
                %s1226 = scalar_lea.vmem %s1086, %s1225
                // While loop
                $region90: #{mlp_forward.1} parent=81 // loop_pre_header
                  _
                $region91: #{mlp_forward.1} parent=81 // loop_header
                  %s1228 = sphi 0, %s1230
                  %p1229 = scmp.ge.s32.totalorder %s1228, %s1221
                  %s1233 = sphi 0, %s1240
                  %s1234 = sphi %s1224, %s1243
                  %s1235 = sphi %s1226, %s1244
                $region92: #{mlp_forward.1} parent=81 // loop_header_branch
                  %1232 = sbr.rel (%p1229) target = $region96
                $region93: #{mlp_forward.1} parent=81 // loop_body
                  %v1236 = vld [vmem:[%s1234] sm:$0xff]
                  %1237 = vst [vmem:[%s1235] sm:$0xff] %v1236
                  %s1238 = sadd.s32 1, %s1233
                  %p1239 = scmp.ge.s32.totalorder %s1238, %s1221
                  %s1240 = scalar_select %p1239, 0, %s1238
                  %s1241 = smul.u32 %s1240, 8
                  %s1242 = smul.u32 %s1240, 8
                  %s1243 = scalar_lea.vmem %s1224, %s1241 [#allocation4]
                  %s1244 = scalar_lea.vmem %s1226, %s1242
                $region94: #{mlp_forward.1} parent=81 // loop_footer
                  %s1230 = sadd.s32 %s1228, 1
                $region95: #{mlp_forward.1} parent=81 // loop_footer_branch
                  %1227 = sbr.rel target = $region91
                $region96: #{mlp_forward.1} parent=81 // loop_exit
                  _
              $region82: #{mlp_forward.1} parent=59 // pred_fallthru
                _
              // Predicated region
              $region97: #{mlp_forward.1} parent=59 // pred_check
                _
              $region98: #{mlp_forward.1} parent=59 // pred_check_branch
                %1246 = sbr.rel target = $region100
              $region99: #{mlp_forward.1} parent=59 // pred_region
                _
              $region100: #{mlp_forward.1} parent=59 // pred_fallthru
                _
            $region60: #{mlp_forward.1} parent=55 // pred_fallthru
              _
            // Predicated region
            $region61: #{mlp_forward.1} parent=55 // pred_check
              _
            $region62: #{mlp_forward.1} parent=55 // pred_check_branch
              %1093 = sbr.rel target = $region64
            $region63: #{mlp_forward.1} parent=55 // pred_region
              %s1095 = sshrl.u32 %s1082, 4
              // While loop
              $region65: #{mlp_forward.1} parent=63 // loop_pre_header
                _
              $region66: #{mlp_forward.1} parent=63 // loop_header
                %s1097 = sphi 0, %s1099
                %p1098 = scmp.ge.s32.totalorder %s1097, %s1095
                %s1102 = sphi 0, %s1139
                %s1103 = sphi %s1075, %s1142
                %s1104 = sphi %s1086, %s1143
              $region67: #{mlp_forward.1} parent=63 // loop_header_branch
                %1101 = sbr.rel (%p1098) target = $region71
              $region68: #{mlp_forward.1} parent=63 // loop_body
                %v1105 = vld [vmem:[%s1103] sm:$0xff]
                %1106 = vst [vmem:[%s1104] sm:$0xff] %v1105
                %v1107 = vld [vmem:[%s1103 + $0x8] sm:$0xff]
                %1108 = vst [vmem:[%s1104 + $0x8] sm:$0xff] %v1107
                %v1109 = vld [vmem:[%s1103 + $0x10] sm:$0xff]
                %1110 = vst [vmem:[%s1104 + $0x10] sm:$0xff] %v1109
                %v1111 = vld [vmem:[%s1103 + $0x18] sm:$0xff]
                %1112 = vst [vmem:[%s1104 + $0x18] sm:$0xff] %v1111
                %v1113 = vld [vmem:[%s1103 + $0x20] sm:$0xff]
                %1114 = vst [vmem:[%s1104 + $0x20] sm:$0xff] %v1113
                %v1115 = vld [vmem:[%s1103 + $0x28] sm:$0xff]
                %1116 = vst [vmem:[%s1104 + $0x28] sm:$0xff] %v1115
                %v1117 = vld [vmem:[%s1103 + $0x30] sm:$0xff]
                %1118 = vst [vmem:[%s1104 + $0x30] sm:$0xff] %v1117
                %v1119 = vld [vmem:[%s1103 + $0x38] sm:$0xff]
                %1120 = vst [vmem:[%s1104 + $0x38] sm:$0xff] %v1119
                %v1121 = vld [vmem:[%s1103 + $0x40] sm:$0xff]
                %1122 = vst [vmem:[%s1104 + $0x40] sm:$0xff] %v1121
                %v1123 = vld [vmem:[%s1103 + $0x48] sm:$0xff]
                %1124 = vst [vmem:[%s1104 + $0x48] sm:$0xff] %v1123
                %v1125 = vld [vmem:[%s1103 + $0x50] sm:$0xff]
                %1126 = vst [vmem:[%s1104 + $0x50] sm:$0xff] %v1125
                %v1127 = vld [vmem:[%s1103 + $0x58] sm:$0xff]
                %1128 = vst [vmem:[%s1104 + $0x58] sm:$0xff] %v1127
                %v1129 = vld [vmem:[%s1103 + $0x60] sm:$0xff]
                %1130 = vst [vmem:[%s1104 + $0x60] sm:$0xff] %v1129
                %v1131 = vld [vmem:[%s1103 + $0x68] sm:$0xff]
                %1132 = vst [vmem:[%s1104 + $0x68] sm:$0xff] %v1131
                %v1133 = vld [vmem:[%s1103 + $0x70] sm:$0xff]
                %1134 = vst [vmem:[%s1104 + $0x70] sm:$0xff] %v1133
                %v1135 = vld [vmem:[%s1103 + $0x78] sm:$0xff]
                %1136 = vst [vmem:[%s1104 + $0x78] sm:$0xff] %v1135
                %s1137 = sadd.s32 1, %s1102
                %p1138 = scmp.ge.s32.totalorder %s1137, %s1095
                %s1139 = scalar_select %p1138, 0, %s1137
                %s1140 = smul.u32 %s1139, 128
                %s1141 = smul.u32 %s1139, 128
                %s1142 = scalar_lea.vmem %s1075, %s1140 [#allocation4]
                %s1143 = scalar_lea.vmem %s1086, %s1141
              $region69: #{mlp_forward.1} parent=63 // loop_footer
                %s1099 = sadd.s32 %s1097, 1
              $region70: #{mlp_forward.1} parent=63 // loop_footer_branch
                %1096 = sbr.rel target = $region66
              $region71: #{mlp_forward.1} parent=63 // loop_exit
                _
              %s1144 = sshrl.u32 %s1082, 4
              %s1145 = sand.u32 %s1082, 15
              %s1146 = smul.u32 %s1144, 16
              %s1147 = smul.u32 8, %s1146
              %s1148 = scalar_lea.vmem %s1075, %s1147 [#allocation4]
              %s1149 = smul.u32 8, %s1146
              %s1150 = scalar_lea.vmem %s1086, %s1149
              // While loop
              $region72: #{mlp_forward.1} parent=63 // loop_pre_header
                _
              $region73: #{mlp_forward.1} parent=63 // loop_header
                %s1152 = sphi 0, %s1154
                %p1153 = scmp.ge.s32.totalorder %s1152, %s1145
                %s1157 = sphi 0, %s1164
                %s1158 = sphi %s1148, %s1167
                %s1159 = sphi %s1150, %s1168
              $region74: #{mlp_forward.1} parent=63 // loop_header_branch
                %1156 = sbr.rel (%p1153) target = $region78
              $region75: #{mlp_forward.1} parent=63 // loop_body
                %v1160 = vld [vmem:[%s1158] sm:$0xff]
                %1161 = vst [vmem:[%s1159] sm:$0xff] %v1160
                %s1162 = sadd.s32 1, %s1157
                %p1163 = scmp.ge.s32.totalorder %s1162, %s1145
                %s1164 = scalar_select %p1163, 0, %s1162
                %s1165 = smul.u32 %s1164, 8
                %s1166 = smul.u32 %s1164, 8
                %s1167 = scalar_lea.vmem %s1148, %s1165 [#allocation4]
                %s1168 = scalar_lea.vmem %s1150, %s1166
              $region76: #{mlp_forward.1} parent=63 // loop_footer
                %s1154 = sadd.s32 %s1152, 1
              $region77: #{mlp_forward.1} parent=63 // loop_footer_branch
                %1151 = sbr.rel target = $region73
              $region78: #{mlp_forward.1} parent=63 // loop_exit
                _
            $region64: #{mlp_forward.1} parent=55 // pred_fallthru
              _
          $region56: #{mlp_forward.1} parent=51 // pred_fallthru
            _
          %1247 = vnop
        $region52: #{mlp_forward.1} parent=47 // pred_fallthru
          _
      $region48: #{mlp_forward.1} parent=5 // pred_fallthru
        _
      %p1248 = scmp.le.s32.totalorder 2, %s20
      // Predicated region
      $region101: #{mlp_forward.1} parent=5 // pred_check
        %p1249 = pneg %p1248
      $region102: #{mlp_forward.1} parent=5 // pred_check_branch
        %1251 = sbr.rel (%p1249) target = $region104
      $region103: #{mlp_forward.1} parent=5 // pred_region
        %s1252 = ssub.s32 %s20, 2
        // Predicated region
        $region105: #{mlp_forward.1} parent=103 // pred_check
          %p1253 = pneg %p201
        $region106: #{mlp_forward.1} parent=103 // pred_check_branch
          %1255 = sbr.rel (%p1253) target = $region108
        $region107: #{mlp_forward.1} parent=103 // pred_region
          %s1256 = sand.u32 %s186, 1
          %s1257 = sand.u32 %s186, 1
          %s1258 = smul.addr %s1257, 128
          %s1259 = scalar_lea.vmem [#allocation4], %s1258
        $region108: #{mlp_forward.1} parent=103 // pred_fallthru
          _
      $region104: #{mlp_forward.1} parent=5 // pred_fallthru
        _
    $region6: #{mlp_forward.1} parent=1 // loop_footer
      %s24 = sadd.s32 1, %s20
    $region7: #{mlp_forward.1} parent=1 // loop_footer_branch
      %19 = sbr.rel target = $region3
    $region8: #{mlp_forward.1} parent=1 // loop_exit
      _

</llo_original>
